<compile_context>
chip_gen: v6e
topology: v6e:2x2x1
jax: 0.10.0
libtpu: 0.0.40
codegen_flags: <defaults>
</compile_context>

<pallas_src>
from functools import partial

import numpy as np
import jax
import jax.numpy as jnp
from jax.experimental import pallas as pl
from jax.experimental.pallas import tpu as pltpu

LANE = 128


def _round_up(x, m):
    return (x + m - 1) // m * m


def _pad2(a, rows, cols):
    out = jnp.zeros((rows, cols), a.dtype)
    return out.at[: a.shape[0], : a.shape[1]].set(a)


def _vmem_cap():
    """3/4 of the per-core VMEM (headroom for compiler scratch / pipeline buffers)."""
    cap = 64 * 1024 * 1024
    try:
        info = pltpu.get_tpu_info()
        cap = int(getattr(info, "vmem_capacity_bytes", cap))
    except Exception:
        pass
    return max(cap * 3 // 4, 32 * 1024 * 1024)


# --------------------------------------------------------------------------------------------
# Kernels
# --------------------------------------------------------------------------------------------
def chebnet_small_kernel(a_ref, x_ref, w_in_ref, b_in_ref, w_cheb_ref, b_cheb_ref,
                         w_out_ref, b_out_ref, out_ref, *, k):
    """Single-invocation path: everything VMEM-resident, all K orders unrolled."""
    x0 = jnp.maximum(
        jnp.dot(x_ref[...], w_in_ref[...], preferred_element_type=jnp.float32) + b_in_ref[...],
        0.0)
    xs = [x0]
    if k > 1:
        a = a_ref[...]                                               # (n_pad, n_pad) bf16
        xs.append(-jnp.dot(a, x0.astype(jnp.bfloat16),
                           preferred_element_type=jnp.float32))
        for _ in range(2, k):
            xs.append(-2.0 * jnp.dot(a, xs[-1].astype(jnp.bfloat16),
                                     preferred_element_type=jnp.float32) - xs[-2])
    slab = jnp.concatenate([v.astype(jnp.bfloat16) for v in xs], axis=-1)   # (n_pad, k*h_pad)
    h = jnp.maximum(
        jnp.dot(slab, w_cheb_ref[...], preferred_element_type=jnp.float32) + b_cheb_ref[...],
        0.0)
    out = jnp.dot(h.astype(jnp.bfloat16), w_out_ref[...],
                  preferred_element_type=jnp.float32) + b_out_ref[...]
    out_ref[...] = out.astype(out_ref.dtype)


def chebnet_tiled_kernel(a_ref, x_ref, w_in_ref, b_in_ref, w_cheb_ref, b_cheb_ref,
                         w_out_ref, b_out_ref, out_ref, xs_ref, *, k, tile_n, h_pad):
    """grid = (k, num_row_tiles): Chebyshev order (slow, sequential) x node-row tile.

    a_ref  : (tile_n, n_pad) bf16 row slab of A_hat   (only DMA'd for orders >= 1)
    x_ref  : (tile_n, f_pad) bf16 row slab of features (only DMA'd for order 0)
    xs_ref : (n_pad, (k-1)*h_pad) bf16 scratch; order i lives in columns [i*h_pad, (i+1)*h_pad)
    """
    o = pl.program_id(0)
    row = pl.multiple_of(pl.program_id(1) * tile_n, tile_n)
    rows = pl.ds(row, tile_n)

    # ---- order 0: X_0 = ReLU(x @ W_in + b_in) for this row tile ----
    @pl.when(o == 0)
    def _():
        h0 = jnp.dot(x_ref[...], w_in_ref[...],
                     preferred_element_type=jnp.float32) + b_in_ref[...]
        xs_ref[rows, pl.ds(0, h_pad)] = jnp.maximum(h0, 0.0).astype(jnp.bfloat16)

    # ---- orders 1..k-2 (lambda_max=2 => re_norm=1):
    #      X_1 = -A_hat @ X_0 ;  X_i = -2 * A_hat @ X_{i-1} - X_{i-2} ----
    for order in range(1, k - 1):
        @pl.when(o == order)
        def _(order=order):
            x_prev = xs_ref[:, pl.ds((order - 1) * h_pad, h_pad)]        # (n_pad, h_pad) bf16
            p = jnp.dot(a_ref[...], x_prev, preferred_element_type=jnp.float32)
            if order == 1:
                xi = -p
            else:
                xi = -2.0 * p - xs_ref[rows, pl.ds((order - 2) * h_pad, h_pad)].astype(jnp.float32)
            xs_ref[rows, pl.ds(order * h_pad, h_pad)] = xi.astype(jnp.bfloat16)

    # ---- final order: X_{k-1} kept local (never stored) + ChebConv linear + ReLU + out linear ----
    @pl.when(o == k - 1)
    def _():
        order = k - 1
        x_prev = xs_ref[:, pl.ds((order - 1) * h_pad, h_pad)]
        p = jnp.dot(a_ref[...], x_prev, preferred_element_type=jnp.float32)
        if order == 1:
            xi = -p
        else:
            xi = -2.0 * p - xs_ref[rows, pl.ds((order - 2) * h_pad, h_pad)].astype(jnp.float32)
        slab = jnp.concatenate([xs_ref[rows, :], xi.astype(jnp.bfloat16)], axis=-1)
        h = jnp.maximum(
            jnp.dot(slab, w_cheb_ref[...], preferred_element_type=jnp.float32) + b_cheb_ref[...],
            0.0)
        out = jnp.dot(h.astype(jnp.bfloat16), w_out_ref[...],
                      preferred_element_type=jnp.float32) + b_out_ref[...]
        out_ref[...] = out.astype(out_ref.dtype)


# --------------------------------------------------------------------------------------------
# One-time preprocessing (cached across forward calls)
# --------------------------------------------------------------------------------------------
def precompute_norm_adj(adj, n_pad):
    """A_hat = D^{-1/2} (A != 0)^T D^{-1/2} (DGL ChebConv unnLaplacian, in-degree clamped >= 1),
    zero-padded to (n_pad, n_pad) and cast to bf16 for the MXU."""
    a = (adj != 0).astype(jnp.float32)
    at = a.T
    deg = jnp.sum(at, axis=1, keepdims=True)                 # in-degree
    d_invsqrt = jax.lax.rsqrt(jnp.maximum(deg, 1.0))
    a_hat = d_invsqrt * at * d_invsqrt.T
    return _pad2(a_hat, n_pad, n_pad).astype(jnp.bfloat16)


def prepare_params(params, k, f_pad, h_pad, out_pad):
    """Zero-pad weights to lane-dense shapes, flatten ChebConv weights to (k*h_pad, h_pad) so the
    K per-order matmuls become one matmul, and cast weight matrices to bf16 (biases stay f32 and
    are added after the f32-accumulated matmuls)."""
    w_cheb_flat = jnp.concatenate(
        [_pad2(params["w_cheb"][i], h_pad, h_pad) for i in range(k)], axis=0)
    return {
        "w_in": _pad2(params["w_in"], f_pad, h_pad).astype(jnp.bfloat16),
        "b_in": _pad2(params["b_in"], 1, h_pad),
        "w_cheb_flat": w_cheb_flat.astype(jnp.bfloat16),
        "b_cheb": _pad2(params["b_cheb"], 1, h_pad),
        "w_out": _pad2(params["w_out"], h_pad, out_pad).astype(jnp.bfloat16),
        "b_out": _pad2(params["b_out"], 1, out_pad),
    }


# --------------------------------------------------------------------------------------------
# Forward wrapper
# --------------------------------------------------------------------------------------------
def chebnet_forward(x, a_hat, p, *, k, out_feat, tile_n=None, force_tiled=False):
    n = x.shape[0]
    n_pad = a_hat.shape[0]
    f_pad = p["w_in"].shape[0]
    h_pad = p["b_in"].shape[1]
    out_pad = p["w_out"].shape[1]
    x_pad = _pad2(x.astype(jnp.float32), n_pad, f_pad).astype(jnp.bfloat16)

    vmem_cap = _vmem_cap()
    # bf16 weight matrices + f32 biases (constant block index -> fetched once).
    weight_bytes = (2 * (f_pad * h_pad + k * h_pad * h_pad + h_pad * out_pad)
                    + 4 * (2 * h_pad + out_pad))

    args = (a_hat, x_pad, p["w_in"], p["b_in"], p["w_cheb_flat"], p["b_cheb"],
            p["w_out"], p["b_out"])

    # ---------------------------- small-graph single-step path ----------------------------
    resident_bytes = (2 * n_pad * n_pad            # A_hat (bf16)
                      + 2 * n_pad * f_pad          # x (bf16)
                      + 4 * n_pad * out_pad        # out (f32)
                      + weight_bytes
                      + 4 * (k + 1) * n_pad * h_pad)   # f32 basis / slab temporaries
    if not force_tiled and resident_bytes <= min(24 * 1024 * 1024, vmem_cap // 2):
        vmem_limit = int(min(max(2 * resident_bytes, 8 * 1024 * 1024), vmem_cap))
        grid_spec = pltpu.PrefetchScalarGridSpec(
            num_scalar_prefetch=0,
            grid=(1,),
            in_specs=[
                pl.BlockSpec((n_pad, n_pad), lambda i: (0, 0)),       # A_hat (bf16)
                pl.BlockSpec((n_pad, f_pad), lambda i: (0, 0)),       # x (bf16)
                pl.BlockSpec((f_pad, h_pad), lambda i: (0, 0)),       # W_in
                pl.BlockSpec((1, h_pad), lambda i: (0, 0)),           # b_in
                pl.BlockSpec((k * h_pad, h_pad), lambda i: (0, 0)),   # W_cheb (flattened)
                pl.BlockSpec((1, h_pad), lambda i: (0, 0)),           # b_cheb
                pl.BlockSpec((h_pad, out_pad), lambda i: (0, 0)),     # W_out
                pl.BlockSpec((1, out_pad), lambda i: (0, 0)),         # b_out
            ],
            out_specs=pl.BlockSpec((n_pad, out_pad), lambda i: (0, 0)),
        )
        out_padded = pl.pallas_call(
            partial(chebnet_small_kernel, k=k),
            out_shape=jax.ShapeDtypeStruct((n_pad, out_pad), jnp.float32),
            grid_spec=grid_spec,
            compiler_params=pltpu.CompilerParams(
                dimension_semantics=("arbitrary",),
                vmem_limit_bytes=vmem_limit,
            ),
        )(*args)
        return out_padded[:n, :out_feat]

    # ---------------------------------- tiled large-N path --------------------------------
    assert k >= 2, "tiled path requires K >= 2 (K == 1 is handled by the single-step path)"
    scratch_bytes = 2 * (k - 1) * n_pad * h_pad                     # bf16 Chebyshev bases
    if tile_n is None:
        tile_n = 128
        for cand in (1024, 512, 256, 128):
            if n_pad % cand != 0:
                continue
            slab_bytes = 2 * (2 * cand * n_pad + 2 * cand * f_pad + 4 * cand * out_pad)
            if slab_bytes + 2 * weight_bytes + scratch_bytes <= vmem_cap - (4 << 20):
                tile_n = cand
                break
    assert n_pad % tile_n == 0 and tile_n % 8 == 0
    num_row_tiles = n_pad // tile_n
    slab_bytes = 2 * (2 * tile_n * n_pad + 2 * tile_n * f_pad + 4 * tile_n * out_pad)
    vmem_limit = int(min(max(slab_bytes + 2 * weight_bytes + scratch_bytes + (4 << 20),
                             8 * 1024 * 1024), vmem_cap))

    grid_spec = pltpu.PrefetchScalarGridSpec(
        num_scalar_prefetch=0,
        grid=(k, num_row_tiles),
        in_specs=[
            # A_hat row slab is unused during order 0 -> constant index there, so Pallas skips
            # the (tile_n, n_pad) DMA for the whole first order.
            pl.BlockSpec((tile_n, n_pad), lambda o, r: (jnp.where(o > 0, r, 0), 0)),
            # x row slab is only consumed during order 0.
            pl.BlockSpec((tile_n, f_pad), lambda o, r: (jnp.where(o == 0, r, 0), 0)),
            pl.BlockSpec((f_pad, h_pad), lambda o, r: (0, 0)),        # W_in (bf16)
            pl.BlockSpec((1, h_pad), lambda o, r: (0, 0)),            # b_in
            pl.BlockSpec((k * h_pad, h_pad), lambda o, r: (0, 0)),    # W_cheb flattened (bf16)
            pl.BlockSpec((1, h_pad), lambda o, r: (0, 0)),            # b_cheb
            pl.BlockSpec((h_pad, out_pad), lambda o, r: (0, 0)),      # W_out (bf16)
            pl.BlockSpec((1, out_pad), lambda o, r: (0, 0)),          # b_out
        ],
        # Output is only produced during the final order: keep its index constant before that so
        # stale blocks are never written back to HBM.
        out_specs=pl.BlockSpec((tile_n, out_pad),
                               lambda o, r, k=k: (jnp.where(o == k - 1, r, 0), 0)),
        scratch_shapes=[pltpu.VMEM((n_pad, (k - 1) * h_pad), jnp.bfloat16)],
    )

    out_padded = pl.pallas_call(
        partial(chebnet_tiled_kernel, k=k, tile_n=tile_n, h_pad=h_pad),
        out_shape=jax.ShapeDtypeStruct((n_pad, out_pad), jnp.float32),
        grid_spec=grid_spec,
        compiler_params=pltpu.CompilerParams(
            # Row axis is NOT "parallel": order i+1 reads every row tile of order i from shared
            # scratch (carried cross-tile dependence) -> both axes stay sequential on one core.
            dimension_semantics=("arbitrary", "arbitrary"),
            vmem_limit_bytes=vmem_limit,
        ),
    )(*args)
    return out_padded[:n, :out_feat]


# --------------------------------------------------------------------------------------------
# Pure-JAX reference
# --------------------------------------------------------------------------------------------
def chebnet_ref(x, adj, params, k, mxu_dtype=jnp.float32):
    """Reference with identical structure. mxu_dtype=bfloat16 mirrors the kernel's MXU-input
    precision (bf16 operands, f32 accumulation); float32 gives full-precision math."""
    def mm(lhs, rhs):
        return jnp.dot(lhs.astype(mxu_dtype), rhs.astype(mxu_dtype),
                       preferred_element_type=jnp.float32)

    a = (adj != 0).astype(jnp.float32)
    at = a.T
    deg = jnp.sum(at, axis=1, keepdims=True)
    d = jax.lax.rsqrt(jnp.maximum(deg, 1.0))
    a_hat = d * at * d.T

    h0 = jnp.maximum(mm(x, params["w_in"]) + params["b_in"], 0.0)
    xs = [h0]
    if k > 1:
        xs.append(-mm(a_hat, xs[0]))
    for _ in range(2, k):
        xs.append(-2.0 * mm(a_hat, xs[-1]) - xs[-2])
    acc = params["b_cheb"]
    for i in range(k):
        acc = acc + mm(xs[i], params["w_cheb"][i])
    h = jnp.maximum(acc, 0.0)
    return mm(h, params["w_out"]) + params["b_out"]


if __name__ == "__main__":
    # ChebNet(in_feats=8, out_feat=4, hidden_layers=[32, 3, 32]):
    #   H = hidden_layers[0] = 32, K = hidden_layers[1] = 3
    N, in_feats, H, K, out_feat = 48, 8, 32, 3, 4

    key = jax.random.PRNGKey(0)
    keys = jax.random.split(key, 8)

    x = jax.random.normal(keys[0], (N, in_feats), jnp.float32)
    # random symmetric adjacency with self-loops (so every node appears in the edge list)
    a = (jax.random.uniform(keys[1], (N, N)) < 0.2).astype(jnp.float32)
    adj = jnp.clip(a + a.T + jnp.eye(N, dtype=jnp.float32), 0.0, 1.0)

    # PyTorch nn.Linear weights stored transposed as (in, out) so the kernel computes x @ W + b.
    params = {
        "w_in":   0.1 * jax.random.normal(keys[2], (in_feats, H), jnp.float32),
        "b_in":   0.1 * jax.random.normal(keys[3], (1, H), jnp.float32),
        "w_cheb": 0.1 * jax.random.normal(keys[4], (K, H, H), jnp.float32),  # ChebConv Linear(K*H -> H)
        "b_cheb": 0.1 * jax.random.normal(keys[5], (1, H), jnp.float32),
        "w_out":  0.1 * jax.random.normal(keys[6], (H, out_feat), jnp.float32),
        "b_out":  0.1 * jax.random.normal(keys[7], (1, out_feat), jnp.float32),
    }

    # One-time per-graph / per-model preprocessing (cached across forward calls).
    n_pad = _round_up(N, LANE)
    f_pad = _round_up(in_feats, LANE)
    h_pad = _round_up(H, LANE)
    out_pad = _round_up(out_feat, LANE)
    a_hat = precompute_norm_adj(adj, n_pad)
    padded_params = prepare_params(params, K, f_pad, h_pad, out_pad)

    # Single-invocation fast path (chosen automatically at this size).
    out_small = jax.block_until_ready(
        chebnet_forward(x, a_hat, padded_params, k=K, out_feat=out_feat))
    # Tiled large-N path, forced here with 2 row tiles to exercise the grid / scratch logic.
    out_tiled = jax.block_until_ready(
        chebnet_forward(x, a_hat, padded_params, k=K, out_feat=out_feat,
                        tile_n=64, force_tiled=True))

    ref_bf16 = np.asarray(chebnet_ref(x, adj, params, K, mxu_dtype=jnp.bfloat16))
    ref_f32 = np.asarray(chebnet_ref(x, adj, params, K, mxu_dtype=jnp.float32))

    for out in (out_small, out_tiled):
        o = np.asarray(out)
        assert o.shape == (N, out_feat)
        # Tight check vs. a reference with the same MXU-input precision as the kernel ...
        assert np.allclose(o, ref_bf16, rtol=5e-3, atol=5e-3), float(np.max(np.abs(o - ref_bf16)))
        # ... and a looser sanity check vs. full-f32 math.
        assert np.allclose(o, ref_f32, rtol=5e-2, atol=5e-2), float(np.max(np.abs(o - ref_f32)))

    # TODO(synk): dropout path is omitted — it is a no-op at the reference default dropout=0.
    print("KERNEL_OK")
</pallas_src>

<mosaic_0001>
module attributes {stable_mosaic.version = 11 : i64} {
  func.func @chebnet_small_kernel(%arg0: i32, %arg1: memref<128x128xbf16, #tpu.memory_space<vmem>>, %arg2: memref<128x128xbf16, #tpu.memory_space<vmem>>, %arg3: memref<128x128xbf16, #tpu.memory_space<vmem>>, %arg4: memref<1x128xf32, #tpu.memory_space<vmem>>, %arg5: memref<384x128xbf16, #tpu.memory_space<vmem>>, %arg6: memref<1x128xf32, #tpu.memory_space<vmem>>, %arg7: memref<128x128xbf16, #tpu.memory_space<vmem>>, %arg8: memref<1x128xf32, #tpu.memory_space<vmem>>, %arg9: memref<128x128xf32, #tpu.memory_space<vmem>>) attributes {dimension_semantics = [#tpu.dimension_semantics<arbitrary>], iteration_bounds = array<i64: 1>, scalar_prefetch = 0 : i64, scratch_operands = 0 : i64, tpu.core_type = #tpu.core_type<tc>, window_params = [{pipeline_mode = #tpu.pipeline_mode<synchronous>, transform_indices = @transform_0, window_bounds = array<i64: 128, 128>}, {pipeline_mode = #tpu.pipeline_mode<synchronous>, transform_indices = @transform_1, window_bounds = array<i64: 128, 128>}, {pipeline_mode = #tpu.pipeline_mode<synchronous>, transform_indices = @transform_2, window_bounds = array<i64: 128, 128>}, {pipeline_mode = #tpu.pipeline_mode<synchronous>, transform_indices = @transform_3, window_bounds = array<i64: 1, 128>}, {pipeline_mode = #tpu.pipeline_mode<synchronous>, transform_indices = @transform_4, window_bounds = array<i64: 384, 128>}, {pipeline_mode = #tpu.pipeline_mode<synchronous>, transform_indices = @transform_5, window_bounds = array<i64: 1, 128>}, {pipeline_mode = #tpu.pipeline_mode<synchronous>, transform_indices = @transform_6, window_bounds = array<i64: 128, 128>}, {pipeline_mode = #tpu.pipeline_mode<synchronous>, transform_indices = @transform_7, window_bounds = array<i64: 1, 128>}, {pipeline_mode = #tpu.pipeline_mode<synchronous>, transform_indices = @transform_8, window_bounds = array<i64: 128, 128>}]} {
    %c0 = arith.constant 0 : index
    %c0_0 = arith.constant 0 : index
    %0 = vector.load %arg2[%c0, %c0_0] : memref<128x128xbf16, #tpu.memory_space<vmem>>, vector<128x128xbf16>
    %c0_1 = arith.constant 0 : index
    %c0_2 = arith.constant 0 : index
    %1 = vector.load %arg3[%c0_1, %c0_2] : memref<128x128xbf16, #tpu.memory_space<vmem>>, vector<128x128xbf16>
    %cst = arith.constant dense<0.000000e+00> : vector<128x128xf32>
    %2 = tpu.matmul %0, %1, %cst {dimension_numbers = #tpu.dot_dimension_numbers<[1], [0], [0], [1], [0, 0, 1, 1], [], []>} : vector<128x128xbf16>, vector<128x128xbf16>, vector<128x128xf32> -> vector<128x128xf32>
    %c0_3 = arith.constant 0 : index
    %c0_4 = arith.constant 0 : index
    %3 = vector.load %arg4[%c0_3, %c0_4] : memref<1x128xf32, #tpu.memory_space<vmem>>, vector<1x128xf32>
    %4 = vector.broadcast %3 : vector<1x128xf32> to vector<128x128xf32>
    %5 = arith.addf %2, %4 : vector<128x128xf32>
    %cst_5 = arith.constant 0.000000e+00 : f32
    %6 = vector.broadcast %cst_5 : f32 to vector<128x128xf32>
    %7 = arith.maximumf %5, %6 : vector<128x128xf32>
    %c0_6 = arith.constant 0 : index
    %c0_7 = arith.constant 0 : index
    %8 = vector.load %arg1[%c0_6, %c0_7] : memref<128x128xbf16, #tpu.memory_space<vmem>>, vector<128x128xbf16>
    %9 = arith.truncf %7 : vector<128x128xf32> to vector<128x128xbf16>
    %cst_8 = arith.constant dense<0.000000e+00> : vector<128x128xf32>
    %10 = tpu.matmul %8, %9, %cst_8 {dimension_numbers = #tpu.dot_dimension_numbers<[1], [0], [0], [1], [0, 0, 1, 1], [], []>} : vector<128x128xbf16>, vector<128x128xbf16>, vector<128x128xf32> -> vector<128x128xf32>
    %cst_9 = arith.constant 0.000000e+00 : f32
    %11 = vector.broadcast %cst_9 : f32 to vector<128x128xf32>
    %12 = arith.subf %11, %10 : vector<128x128xf32>
    %13 = arith.truncf %12 : vector<128x128xf32> to vector<128x128xbf16>
    %cst_10 = arith.constant dense<0.000000e+00> : vector<128x128xf32>
    %14 = tpu.matmul %8, %13, %cst_10 {dimension_numbers = #tpu.dot_dimension_numbers<[1], [0], [0], [1], [0, 0, 1, 1], [], []>} : vector<128x128xbf16>, vector<128x128xbf16>, vector<128x128xf32> -> vector<128x128xf32>
    %cst_11 = arith.constant -2.000000e+00 : f32
    %15 = vector.broadcast %cst_11 : f32 to vector<128x128xf32>
    %16 = arith.mulf %15, %14 : vector<128x128xf32>
    %17 = arith.subf %16, %7 : vector<128x128xf32>
    %18 = arith.truncf %7 : vector<128x128xf32> to vector<128x128xbf16>
    %19 = arith.truncf %12 : vector<128x128xf32> to vector<128x128xbf16>
    %20 = arith.truncf %17 : vector<128x128xf32> to vector<128x128xbf16>
    %21 = tpu.concatenate %18, %19, %20 in 1 : vector<128x128xbf16>, vector<128x128xbf16>, vector<128x128xbf16> -> vector<128x384xbf16>
    %c0_12 = arith.constant 0 : index
    %c0_13 = arith.constant 0 : index
    %22 = vector.load %arg5[%c0_12, %c0_13] : memref<384x128xbf16, #tpu.memory_space<vmem>>, vector<384x128xbf16>
    %cst_14 = arith.constant dense<0.000000e+00> : vector<128x128xf32>
    %23 = tpu.matmul %21, %22, %cst_14 {dimension_numbers = #tpu.dot_dimension_numbers<[1], [0], [0], [1], [0, 0, 1, 1], [], []>} : vector<128x384xbf16>, vector<384x128xbf16>, vector<128x128xf32> -> vector<128x128xf32>
    %c0_15 = arith.constant 0 : index
    %c0_16 = arith.constant 0 : index
    %24 = vector.load %arg6[%c0_15, %c0_16] : memref<1x128xf32, #tpu.memory_space<vmem>>, vector<1x128xf32>
    %25 = vector.broadcast %24 : vector<1x128xf32> to vector<128x128xf32>
    %26 = arith.addf %23, %25 : vector<128x128xf32>
    %cst_17 = arith.constant 0.000000e+00 : f32
    %27 = vector.broadcast %cst_17 : f32 to vector<128x128xf32>
    %28 = arith.maximumf %26, %27 : vector<128x128xf32>
    %29 = arith.truncf %28 : vector<128x128xf32> to vector<128x128xbf16>
    %c0_18 = arith.constant 0 : index
    %c0_19 = arith.constant 0 : index
    %30 = vector.load %arg7[%c0_18, %c0_19] : memref<128x128xbf16, #tpu.memory_space<vmem>>, vector<128x128xbf16>
    %cst_20 = arith.constant dense<0.000000e+00> : vector<128x128xf32>
    %31 = tpu.matmul %29, %30, %cst_20 {dimension_numbers = #tpu.dot_dimension_numbers<[1], [0], [0], [1], [0, 0, 1, 1], [], []>} : vector<128x128xbf16>, vector<128x128xbf16>, vector<128x128xf32> -> vector<128x128xf32>
    %c0_21 = arith.constant 0 : index
    %c0_22 = arith.constant 0 : index
    %32 = vector.load %arg8[%c0_21, %c0_22] : memref<1x128xf32, #tpu.memory_space<vmem>>, vector<1x128xf32>
    %33 = vector.broadcast %32 : vector<1x128xf32> to vector<128x128xf32>
    %34 = arith.addf %31, %33 : vector<128x128xf32>
    %c0_23 = arith.constant 0 : index
    %c0_24 = arith.constant 0 : index
    %35 = vector.load %arg9[%c0_23, %c0_24] : memref<128x128xf32, #tpu.memory_space<vmem>>, vector<128x128xf32>
    tpu.vector_store %arg9[%c0_23, %c0_24], %34 {strides = array<i32>} : memref<128x128xf32, #tpu.memory_space<vmem>>, vector<128x128xf32>,
    return
  }
  func.func @transform_0(%arg0: i32) -> (i32, i32) {
    %c0_i32 = arith.constant 0 : i32
    %c0_i32_0 = arith.constant 0 : i32
    %c0_i32_1 = arith.constant 0 : i32
    return %c0_i32, %c0_i32_0 : i32, i32
  }
  func.func @transform_1(%arg0: i32) -> (i32, i32) {
    %c0_i32 = arith.constant 0 : i32
    %c0_i32_0 = arith.constant 0 : i32
    %c0_i32_1 = arith.constant 0 : i32
    return %c0_i32, %c0_i32_0 : i32, i32
  }
  func.func @transform_2(%arg0: i32) -> (i32, i32) {
    %c0_i32 = arith.constant 0 : i32
    %c0_i32_0 = arith.constant 0 : i32
    %c0_i32_1 = arith.constant 0 : i32
    return %c0_i32, %c0_i32_0 : i32, i32
  }
  func.func @transform_3(%arg0: i32) -> (i32, i32) {
    %c0_i32 = arith.constant 0 : i32
    %c0_i32_0 = arith.constant 0 : i32
    %c0_i32_1 = arith.constant 0 : i32
    return %c0_i32, %c0_i32_0 : i32, i32
  }
  func.func @transform_4(%arg0: i32) -> (i32, i32) {
    %c0_i32 = arith.constant 0 : i32
    %c0_i32_0 = arith.constant 0 : i32
    %c0_i32_1 = arith.constant 0 : i32
    return %c0_i32, %c0_i32_0 : i32, i32
  }
  func.func @transform_5(%arg0: i32) -> (i32, i32) {
    %c0_i32 = arith.constant 0 : i32
    %c0_i32_0 = arith.constant 0 : i32
    %c0_i32_1 = arith.constant 0 : i32
    return %c0_i32, %c0_i32_0 : i32, i32
  }
  func.func @transform_6(%arg0: i32) -> (i32, i32) {
    %c0_i32 = arith.constant 0 : i32
    %c0_i32_0 = arith.constant 0 : i32
    %c0_i32_1 = arith.constant 0 : i32
    return %c0_i32, %c0_i32_0 : i32, i32
  }
  func.func @transform_7(%arg0: i32) -> (i32, i32) {
    %c0_i32 = arith.constant 0 : i32
    %c0_i32_0 = arith.constant 0 : i32
    %c0_i32_1 = arith.constant 0 : i32
    return %c0_i32, %c0_i32_0 : i32, i32
  }
  func.func @transform_8(%arg0: i32) -> (i32, i32) {
    %c0_i32 = arith.constant 0 : i32
    %c0_i32_0 = arith.constant 0 : i32
    %c0_i32_1 = arith.constant 0 : i32
    return %c0_i32, %c0_i32_0 : i32, i32
  }
}

</mosaic_0001>

<llo_original>
// kernel: tpu_custom_call.1
$region0: #{tpu_custom_call.1}
  #allocation0 [shape = 'u32[]', space=smem, size = 0x4, offset = 0x4, fixed_abs, tag = 'smem constant byte address 0x4 - core index']
  #allocation1 [shape = 'u32[144,128]{1,0:T(1,128)}', space=vmem, size = 0x12000, scoped, tag = 'internal scratch']
  %s0 = inlined_call_operand.hbm [shape: bf16[128,128], index: 0, kind: input, shape index: {}]
  %s1 = inlined_call_operand.hbm [shape: bf16[128,128], index: 1, kind: input, shape index: {}]
  %s2 = inlined_call_operand.hbm [shape: bf16[128,128], index: 2, kind: input, shape index: {}]
  %s3 = inlined_call_operand.vmem [shape: f32[1,128], index: 3, kind: input, shape index: {}]
  %s4 = inlined_call_operand.hbm [shape: bf16[384,128], index: 4, kind: input, shape index: {}]
  %s5 = inlined_call_operand.vmem [shape: f32[1,128], index: 5, kind: input, shape index: {}]
  %s6 = inlined_call_operand.hbm [shape: bf16[128,128], index: 6, kind: input, shape index: {}]
  %s7 = inlined_call_operand.vmem [shape: f32[1,128], index: 7, kind: input, shape index: {}]
  %s8 = inlined_call_operand.hbm [shape: f32[128,128], index: 8, kind: output, shape index: {}]
  %s9 = sld [smem:[#allocation0]]
  $region62: #{tpu_custom_call.1} parent=0
    _
  %s11 = ssub.s32 1, %s9
  %s12 = scalar_select 0, %s11, %s9
  $region1: #{tpu_custom_call.1} parent=0
    #allocation2 [shape = 'u8[32768]{0}', space=vmem, size = 0x8000, scoped, tag = 'input window, operand 0, single buffered']
    #allocation3 [shape = 's32[1]{0}', space=sflag, size = 0x4, scoped, tag = 'scoped memory for tpu_custom_call.1']
    #allocation4 [shape = 's32[1]{0}', space=sflag, size = 0x4, scoped, tag = 'scoped memory for tpu_custom_call.1']
    #allocation5 [shape = 'u8[32768]{0}', space=vmem, size = 0x8000, scoped, tag = 'input window, operand 1, single buffered']
    #allocation6 [shape = 's32[1]{0}', space=sflag, size = 0x4, scoped, tag = 'scoped memory for tpu_custom_call.1']
    #allocation7 [shape = 'u8[32768]{0}', space=vmem, size = 0x8000, scoped, tag = 'input window, operand 2, single buffered']
    #allocation8 [shape = 'u8[98304]{0}', space=vmem, size = 0x18000, scoped, tag = 'input window, operand 4, single buffered']
    #allocation9 [shape = 's32[1]{0}', space=sflag, size = 0x4, scoped, tag = 'scoped memory for tpu_custom_call.1']
    #allocation10 [shape = 'u8[32768]{0}', space=vmem, size = 0x8000, scoped, tag = 'input window, operand 6, single buffered']
    #allocation11 [shape = 'u8[65536]{0}', space=vmem, size = 0x10000, scoped, tag = 'output window, operand 0, single buffered']
    %13 = vsyncpa [#allocation3], 0
    %14 = vsyncpa [#allocation6], 0
    %15 = vsyncpa [#allocation9], 0
    %16 = vsyncpa [#allocation4], 0
    // Predicated region
    $region2: #{tpu_custom_call.1} parent=1 // pred_check
      _
    $region3: #{tpu_custom_call.1} parent=1 // pred_check_branch
      %18 = sbr.rel (0) target = $region5
    $region4: #{tpu_custom_call.1} parent=1 // pred_region
      %s20 = ssub.s32 1024, 1024
      %21 = vsyncadd [#allocation3], %s20
      %s22 = sshll.u32 [#allocation2], 4
      %s23 = int_to_ptr.vmem [resolvable:$true] %s22
      %28 = dma.hbm_to_vmem [thread:$0]  %s0, 1024, %s23, [#allocation3], 64, 64, 4
    $region5: #{tpu_custom_call.1} parent=1 // pred_fallthru
      _
    // Predicated region
    $region6: #{tpu_custom_call.1} parent=1 // pred_check
      _
    $region7: #{tpu_custom_call.1} parent=1 // pred_check_branch
      %30 = sbr.rel (0) target = $region9
    $region8: #{tpu_custom_call.1} parent=1 // pred_region
      %s32 = ssub.s32 1024, 1024
      %33 = vsyncadd [#allocation6], %s32
      %s34 = sshll.u32 [#allocation5], 4
      %s35 = int_to_ptr.vmem [resolvable:$true] %s34
      %40 = dma.hbm_to_vmem [thread:$0]  %s1, 1024, %s35, [#allocation6], 64, 64, 4
    $region9: #{tpu_custom_call.1} parent=1 // pred_fallthru
      _
    // Predicated region
    $region10: #{tpu_custom_call.1} parent=1 // pred_check
      _
    $region11: #{tpu_custom_call.1} parent=1 // pred_check_branch
      %42 = sbr.rel (0) target = $region13
    $region12: #{tpu_custom_call.1} parent=1 // pred_region
      %s44 = ssub.s32 1024, 1024
      %45 = vsyncadd [#allocation6], %s44
      %s46 = sshll.u32 [#allocation7], 4
      %s47 = int_to_ptr.vmem [resolvable:$true] %s46
      %52 = dma.hbm_to_vmem [thread:$0]  %s2, 1024, %s47, [#allocation6], 64, 64, 4
    $region13: #{tpu_custom_call.1} parent=1 // pred_fallthru
      _
    // Predicated region
    $region14: #{tpu_custom_call.1} parent=1 // pred_check
      _
    $region15: #{tpu_custom_call.1} parent=1 // pred_check_branch
      %54 = sbr.rel (0) target = $region17
    $region16: #{tpu_custom_call.1} parent=1 // pred_region
      _
    $region17: #{tpu_custom_call.1} parent=1 // pred_fallthru
      _
    // Predicated region
    $region18: #{tpu_custom_call.1} parent=1 // pred_check
      _
    $region19: #{tpu_custom_call.1} parent=1 // pred_check_branch
      %56 = sbr.rel (0) target = $region21
    $region20: #{tpu_custom_call.1} parent=1 // pred_region
      %s58 = ssub.s32 3072, 3072
      %59 = vsyncadd [#allocation9], %s58
      %s60 = sshll.u32 [#allocation8], 4
      %s61 = int_to_ptr.vmem [resolvable:$true] %s60
      %66 = dma.hbm_to_vmem [thread:$0]  %s4, 3072, %s61, [#allocation9], 64, 64, 4
    $region21: #{tpu_custom_call.1} parent=1 // pred_fallthru
      _
    // Predicated region
    $region22: #{tpu_custom_call.1} parent=1 // pred_check
      _
    $region23: #{tpu_custom_call.1} parent=1 // pred_check_branch
      %68 = sbr.rel (0) target = $region25
    $region24: #{tpu_custom_call.1} parent=1 // pred_region
      _
    $region25: #{tpu_custom_call.1} parent=1 // pred_fallthru
      _
    // Predicated region
    $region26: #{tpu_custom_call.1} parent=1 // pred_check
      _
    $region27: #{tpu_custom_call.1} parent=1 // pred_check_branch
      %70 = sbr.rel (0) target = $region29
    $region28: #{tpu_custom_call.1} parent=1 // pred_region
      %s72 = ssub.s32 1024, 1024
      %73 = vsyncadd [#allocation9], %s72
      %s74 = sshll.u32 [#allocation10], 4
      %s75 = int_to_ptr.vmem [resolvable:$true] %s74
      %80 = dma.hbm_to_vmem [thread:$0]  %s6, 1024, %s75, [#allocation9], 64, 64, 4
    $region29: #{tpu_custom_call.1} parent=1 // pred_fallthru
      _
    // Predicated region
    $region30: #{tpu_custom_call.1} parent=1 // pred_check
      _
    $region31: #{tpu_custom_call.1} parent=1 // pred_check_branch
      %82 = sbr.rel (0) target = $region33
    $region32: #{tpu_custom_call.1} parent=1 // pred_region
      _
    $region33: #{tpu_custom_call.1} parent=1 // pred_fallthru
      _
    // Predicated region
    $region34: #{tpu_custom_call.1} parent=1 // pred_check
      _
    $region35: #{tpu_custom_call.1} parent=1 // pred_check_branch
      %84 = sbr.rel (0) target = $region37
    $region36: #{tpu_custom_call.1} parent=1 // pred_region
      %85 = dma.done [#allocation3], 1024
    $region37: #{tpu_custom_call.1} parent=1 // pred_fallthru
      _
    // Predicated region
    $region38: #{tpu_custom_call.1} parent=1 // pred_check
      _
    $region39: #{tpu_custom_call.1} parent=1 // pred_check_branch
      %87 = sbr.rel (0) target = $region41
    $region40: #{tpu_custom_call.1} parent=1 // pred_region
      %88 = dma.done [#allocation6], 1024
    $region41: #{tpu_custom_call.1} parent=1 // pred_fallthru
      _
    // Predicated region
    $region42: #{tpu_custom_call.1} parent=1 // pred_check
      _
    $region43: #{tpu_custom_call.1} parent=1 // pred_check_branch
      %90 = sbr.rel (0) target = $region45
    $region44: #{tpu_custom_call.1} parent=1 // pred_region
      %91 = dma.done [#allocation6], 1024
    $region45: #{tpu_custom_call.1} parent=1 // pred_fallthru
      _
    // Predicated region
    $region46: #{tpu_custom_call.1} parent=1 // pred_check
      _
    $region47: #{tpu_custom_call.1} parent=1 // pred_check_branch
      %93 = sbr.rel (0) target = $region49
    $region48: #{tpu_custom_call.1} parent=1 // pred_region
      %94 = dma.done [#allocation9], 3072
    $region49: #{tpu_custom_call.1} parent=1 // pred_fallthru
      _
    // Predicated region
    $region50: #{tpu_custom_call.1} parent=1 // pred_check
      _
    $region51: #{tpu_custom_call.1} parent=1 // pred_check_branch
      %96 = sbr.rel (0) target = $region53
    $region52: #{tpu_custom_call.1} parent=1 // pred_region
      %97 = dma.done [#allocation9], 1024
    $region53: #{tpu_custom_call.1} parent=1 // pred_fallthru
      _
    %v99 = vld [vmem:[#allocation5] sm:$0xf]
    %v100 = vld [vmem:[#allocation5 + $0x4] sm:$0xf]
    %v101 = vld [vmem:[#allocation5 + $0x8] sm:$0xf]
    %v102 = vld [vmem:[#allocation5 + $0xc] sm:$0xf]
    %v103 = vld [vmem:[#allocation5 + $0x10] sm:$0xf]
    %v104 = vld [vmem:[#allocation5 + $0x14] sm:$0xf]
    %v105 = vld [vmem:[#allocation5 + $0x18] sm:$0xf]
    %v106 = vld [vmem:[#allocation5 + $0x1c] sm:$0xf]
    %v107 = vld [vmem:[#allocation5 + $0x20] sm:$0xf]
    %v108 = vld [vmem:[#allocation5 + $0x24] sm:$0xf]
    %v109 = vld [vmem:[#allocation5 + $0x28] sm:$0xf]
    %v110 = vld [vmem:[#allocation5 + $0x2c] sm:$0xf]
    %v111 = vld [vmem:[#allocation5 + $0x30] sm:$0xf]
    %v112 = vld [vmem:[#allocation5 + $0x34] sm:$0xf]
    %v113 = vld [vmem:[#allocation5 + $0x38] sm:$0xf]
    %v114 = vld [vmem:[#allocation5 + $0x3c] sm:$0xf]
    %v115 = vld [vmem:[#allocation7] sm:$0xf]
    %v116 = vld [vmem:[#allocation7 + $0x4] sm:$0xf]
    %v117 = vld [vmem:[#allocation7 + $0x8] sm:$0xf]
    %v118 = vld [vmem:[#allocation7 + $0xc] sm:$0xf]
    %v119 = vld [vmem:[#allocation7 + $0x10] sm:$0xf]
    %v120 = vld [vmem:[#allocation7 + $0x14] sm:$0xf]
    %v121 = vld [vmem:[#allocation7 + $0x18] sm:$0xf]
    %v122 = vld [vmem:[#allocation7 + $0x1c] sm:$0xf]
    %v123 = vld [vmem:[#allocation7 + $0x20] sm:$0xf]
    %v124 = vld [vmem:[#allocation7 + $0x24] sm:$0xf]
    %v125 = vld [vmem:[#allocation7 + $0x28] sm:$0xf]
    %v126 = vld [vmem:[#allocation7 + $0x2c] sm:$0xf]
    %v127 = vld [vmem:[#allocation7 + $0x30] sm:$0xf]
    %v128 = vld [vmem:[#allocation7 + $0x34] sm:$0xf]
    %v129 = vld [vmem:[#allocation7 + $0x38] sm:$0xf]
    %v130 = vld [vmem:[#allocation7 + $0x3c] sm:$0xf]
    %v131 = vld [vmem:[%s3] sm:$0x1]
    %v133 = vlaneseq
    %v134 = vshrl.u32 %v133, 7
    %v135 = vsub.s32 0, %v134
    %v136 = vrot.slane %v131, %v135
    %v154 = vunpack.c.l.b16 %v99
    %v155 = vunpack.c.l.b16 %v100
    %v156 = vunpack.c.l.b16 %v101
    %v157 = vunpack.c.l.b16 %v102
    %v158 = vunpack.c.l.b16 %v103
    %v159 = vunpack.c.l.b16 %v104
    %v160 = vunpack.c.l.b16 %v105
    %v161 = vunpack.c.l.b16 %v106
    %v162 = vunpack.c.l.b16 %v107
    %v163 = vunpack.c.l.b16 %v108
    %v164 = vunpack.c.l.b16 %v109
    %v165 = vunpack.c.l.b16 %v110
    %v166 = vunpack.c.l.b16 %v111
    %v167 = vunpack.c.l.b16 %v112
    %v168 = vunpack.c.l.b16 %v113
    %v169 = vunpack.c.l.b16 %v114
    %v170 = vpack.c.b16 %v155, %v154
    %v171 = vpack.c.b16 %v157, %v156
    %v172 = vpack.c.b16 %v159, %v158
    %v173 = vpack.c.b16 %v161, %v160
    %v174 = vpack.c.b16 %v163, %v162
    %v175 = vpack.c.b16 %v165, %v164
    %v176 = vpack.c.b16 %v167, %v166
    %v177 = vpack.c.b16 %v169, %v168
    %v202 = vunpack.c.l.b16 %v115
    %v203 = vunpack.c.l.b16 %v116
    %v204 = vunpack.c.l.b16 %v117
    %v205 = vunpack.c.l.b16 %v118
    %v206 = vunpack.c.l.b16 %v119
    %v207 = vunpack.c.l.b16 %v120
    %v208 = vunpack.c.l.b16 %v121
    %v209 = vunpack.c.l.b16 %v122
    %v210 = vunpack.c.l.b16 %v123
    %v211 = vunpack.c.l.b16 %v124
    %v212 = vunpack.c.l.b16 %v125
    %v213 = vunpack.c.l.b16 %v126
    %v214 = vunpack.c.l.b16 %v127
    %v215 = vunpack.c.l.b16 %v128
    %v216 = vunpack.c.l.b16 %v129
    %v217 = vunpack.c.l.b16 %v130
    %v218 = vpack.c.b16 %v203, %v202
    %v219 = vpack.c.b16 %v205, %v204
    %v220 = vpack.c.b16 %v207, %v206
    %v221 = vpack.c.b16 %v209, %v208
    %v222 = vpack.c.b16 %v211, %v210
    %v223 = vpack.c.b16 %v213, %v212
    %v224 = vpack.c.b16 %v215, %v214
    %v225 = vpack.c.b16 %v217, %v216
    %234 = vmatprep.subr.bf16.mxu0 0
    %235 = vmatpush1.bf16.msra.mxu0 %v225
    %236 = vmatprep.subr.bf16.mxu0 0
    %237 = vmatpush1.bf16.msra.mxu0 %v224
    %238 = vmatprep.subr.bf16.mxu0 0
    %239 = vmatpush1.bf16.msra.mxu0 %v223
    %240 = vmatprep.subr.bf16.mxu0 0
    %241 = vmatpush1.bf16.msra.mxu0 %v222
    %242 = vmatprep.subr.bf16.mxu0 0
    %243 = vmatpush1.bf16.msra.mxu0 %v221
    %244 = vmatprep.subr.bf16.mxu0 0
    %245 = vmatpush1.bf16.msra.mxu0 %v220
    %246 = vmatprep.subr.bf16.mxu0 0
    %247 = vmatpush1.bf16.msra.mxu0 %v219
    %248 = vmatprep.subr.bf16.mxu0 0
    %249 = vmatpush1.bf16.msra.mxu0 %v218
    %250 = vmatprep.subr.bf16.mxu0 0
    %251 = vmatpush2.bf16.msra.mxu0 0
    %252 = vmatprep.subr.bf16.mxu0 0
    %253 = vmatpush2.bf16.msra.mxu0 0
    %254 = vmatprep.subr.bf16.mxu0 0
    %255 = vmatpush2.bf16.msra.mxu0 0
    %256 = vmatprep.subr.bf16.mxu0 0
    %257 = vmatpush2.bf16.msra.mxu0 0
    %258 = vmatprep.subr.bf16.mxu0 0
    %259 = vmatpush2.bf16.msra.mxu0 0
    %260 = vmatprep.subr.bf16.mxu0 0
    %261 = vmatpush2.bf16.msra.mxu0 0
    %262 = vmatprep.subr.bf16.mxu0 0
    %263 = vmatpush2.bf16.msra.mxu0 0
    %264 = vmatprep.subr.bf16.mxu0 0
    %265 = vmatpush2.bf16.msra.mxu0 0
    %266 = vmatprep.mubr.bf16.mxu0 0
    %267 = vmatmul.mubr.bf16.gmra.mxu0 %v170
    %v268 = vpop.f32.mrf.mxu0
    %v269 = vadd.f32 %v136, %v268
    %v270 = vpop.f32.mrf.mxu0
    %v271 = vpop.f32.mrf.mxu0
    %v272 = vadd.f32 %v136, %v271
    %v273 = vpop.f32.mrf.mxu0
    %274 = vmatprep.mubr.bf16.mxu0 0
    %275 = vmatmul.mubr.bf16.gmra.mxu0 %v171
    %v276 = vpop.f32.mrf.mxu0
    %v277 = vadd.f32 %v136, %v276
    %v278 = vpop.f32.mrf.mxu0
    %v279 = vpop.f32.mrf.mxu0
    %v280 = vadd.f32 %v136, %v279
    %v281 = vpop.f32.mrf.mxu0
    %282 = vmatprep.mubr.bf16.mxu0 0
    %283 = vmatmul.mubr.bf16.gmra.mxu0 %v172
    %v284 = vpop.f32.mrf.mxu0
    %v285 = vadd.f32 %v136, %v284
    %v286 = vpop.f32.mrf.mxu0
    %v287 = vpop.f32.mrf.mxu0
    %v288 = vadd.f32 %v136, %v287
    %v289 = vpop.f32.mrf.mxu0
    %290 = vmatprep.mubr.bf16.mxu0 0
    %291 = vmatmul.mubr.bf16.gmra.mxu0 %v173
    %v292 = vpop.f32.mrf.mxu0
    %v293 = vadd.f32 %v136, %v292
    %v294 = vpop.f32.mrf.mxu0
    %v295 = vpop.f32.mrf.mxu0
    %v296 = vadd.f32 %v136, %v295
    %v297 = vpop.f32.mrf.mxu0
    %298 = vmatprep.mubr.bf16.mxu0 0
    %299 = vmatmul.mubr.bf16.gmra.mxu0 %v174
    %v300 = vpop.f32.mrf.mxu0
    %v301 = vadd.f32 %v136, %v300
    %v302 = vpop.f32.mrf.mxu0
    %v303 = vpop.f32.mrf.mxu0
    %v304 = vadd.f32 %v136, %v303
    %v305 = vpop.f32.mrf.mxu0
    %306 = vmatprep.mubr.bf16.mxu0 0
    %307 = vmatmul.mubr.bf16.gmra.mxu0 %v175
    %v308 = vpop.f32.mrf.mxu0
    %v309 = vadd.f32 %v136, %v308
    %v310 = vpop.f32.mrf.mxu0
    %v311 = vpop.f32.mrf.mxu0
    %v312 = vadd.f32 %v136, %v311
    %v313 = vpop.f32.mrf.mxu0
    %314 = vmatprep.mubr.bf16.mxu0 0
    %315 = vmatmul.mubr.bf16.gmra.mxu0 %v176
    %v316 = vpop.f32.mrf.mxu0
    %v317 = vadd.f32 %v136, %v316
    %v318 = vpop.f32.mrf.mxu0
    %v319 = vpop.f32.mrf.mxu0
    %v320 = vadd.f32 %v136, %v319
    %v321 = vpop.f32.mrf.mxu0
    %322 = vmatprep.mubr.bf16.mxu0 0
    %323 = vmatmul.mubr.bf16.gmra.mxu0 %v177
    %v324 = vpop.f32.mrf.mxu0
    %v325 = vadd.f32 %v136, %v324
    %v326 = vpop.f32.mrf.mxu0
    %v327 = vpop.f32.mrf.mxu0
    %v328 = vadd.f32 %v136, %v327
    %v329 = vpop.f32.mrf.mxu0
    %330 = vdwg.mxu0
    %v331 = vmax.f32 %v269, 0.0
    %v332 = vmax.f32 %v272, 0.0
    %v333 = vmax.f32 %v277, 0.0
    %v334 = vmax.f32 %v280, 0.0
    %v335 = vmax.f32 %v285, 0.0
    %v336 = vmax.f32 %v288, 0.0
    %v337 = vmax.f32 %v293, 0.0
    %v338 = vmax.f32 %v296, 0.0
    %v339 = vmax.f32 %v301, 0.0
    %v340 = vmax.f32 %v304, 0.0
    %v341 = vmax.f32 %v309, 0.0
    %v342 = vmax.f32 %v312, 0.0
    %v343 = vmax.f32 %v317, 0.0
    %v344 = vmax.f32 %v320, 0.0
    %v345 = vmax.f32 %v325, 0.0
    %v346 = vmax.f32 %v328, 0.0
    %v347 = vld [vmem:[#allocation2] sm:$0xf]
    %v348 = vld [vmem:[#allocation2 + $0x4] sm:$0xf]
    %v349 = vld [vmem:[#allocation2 + $0x8] sm:$0xf]
    %v350 = vld [vmem:[#allocation2 + $0xc] sm:$0xf]
    %v351 = vld [vmem:[#allocation2 + $0x10] sm:$0xf]
    %v352 = vld [vmem:[#allocation2 + $0x14] sm:$0xf]
    %v353 = vld [vmem:[#allocation2 + $0x18] sm:$0xf]
    %v354 = vld [vmem:[#allocation2 + $0x1c] sm:$0xf]
    %v355 = vld [vmem:[#allocation2 + $0x20] sm:$0xf]
    %v356 = vld [vmem:[#allocation2 + $0x24] sm:$0xf]
    %v357 = vld [vmem:[#allocation2 + $0x28] sm:$0xf]
    %v358 = vld [vmem:[#allocation2 + $0x2c] sm:$0xf]
    %v359 = vld [vmem:[#allocation2 + $0x30] sm:$0xf]
    %v360 = vld [vmem:[#allocation2 + $0x34] sm:$0xf]
    %v361 = vld [vmem:[#allocation2 + $0x38] sm:$0xf]
    %v362 = vld [vmem:[#allocation2 + $0x3c] sm:$0xf]
    %v363 = vpack.c.bf16 %v332, %v331
    %v364 = vpack.c.bf16 %v334, %v333
    %v365 = vpack.c.bf16 %v336, %v335
    %v366 = vpack.c.bf16 %v338, %v337
    %v367 = vpack.c.bf16 %v340, %v339
    %v368 = vpack.c.bf16 %v342, %v341
    %v369 = vpack.c.bf16 %v344, %v343
    %v370 = vpack.c.bf16 %v346, %v345
    %v387 = vunpack.c.l.b16 %v347
    %v388 = vunpack.c.l.b16 %v348
    %v389 = vunpack.c.l.b16 %v349
    %v390 = vunpack.c.l.b16 %v350
    %v391 = vunpack.c.l.b16 %v351
    %v392 = vunpack.c.l.b16 %v352
    %v393 = vunpack.c.l.b16 %v353
    %v394 = vunpack.c.l.b16 %v354
    %v395 = vunpack.c.l.b16 %v355
    %v396 = vunpack.c.l.b16 %v356
    %v397 = vunpack.c.l.b16 %v357
    %v398 = vunpack.c.l.b16 %v358
    %v399 = vunpack.c.l.b16 %v359
    %v400 = vunpack.c.l.b16 %v360
    %v401 = vunpack.c.l.b16 %v361
    %v402 = vunpack.c.l.b16 %v362
    %v403 = vpack.c.b16 %v388, %v387
    %v404 = vpack.c.b16 %v390, %v389
    %v405 = vpack.c.b16 %v392, %v391
    %v406 = vpack.c.b16 %v394, %v393
    %v407 = vpack.c.b16 %v396, %v395
    %v408 = vpack.c.b16 %v398, %v397
    %v409 = vpack.c.b16 %v400, %v399
    %v410 = vpack.c.b16 %v402, %v401
    %419 = vmatprep.subr.bf16.mxu0 0
    %420 = vmatpush1.bf16.msra.mxu0 %v370
    %421 = vmatprep.subr.bf16.mxu0 0
    %422 = vmatpush1.bf16.msra.mxu0 %v369
    %423 = vmatprep.subr.bf16.mxu0 0
    %424 = vmatpush1.bf16.msra.mxu0 %v368
    %425 = vmatprep.subr.bf16.mxu0 0
    %426 = vmatpush1.bf16.msra.mxu0 %v367
    %427 = vmatprep.subr.bf16.mxu0 0
    %428 = vmatpush1.bf16.msra.mxu0 %v366
    %429 = vmatprep.subr.bf16.mxu0 0
    %430 = vmatpush1.bf16.msra.mxu0 %v365
    %431 = vmatprep.subr.bf16.mxu0 0
    %432 = vmatpush1.bf16.msra.mxu0 %v364
    %433 = vmatprep.subr.bf16.mxu0 0
    %434 = vmatpush1.bf16.msra.mxu0 %v363
    %435 = vmatprep.subr.bf16.mxu0 0
    %436 = vmatpush2.bf16.msra.mxu0 0
    %437 = vmatprep.subr.bf16.mxu0 0
    %438 = vmatpush2.bf16.msra.mxu0 0
    %439 = vmatprep.subr.bf16.mxu0 0
    %440 = vmatpush2.bf16.msra.mxu0 0
    %441 = vmatprep.subr.bf16.mxu0 0
    %442 = vmatpush2.bf16.msra.mxu0 0
    %443 = vmatprep.subr.bf16.mxu0 0
    %444 = vmatpush2.bf16.msra.mxu0 0
    %445 = vmatprep.subr.bf16.mxu0 0
    %446 = vmatpush2.bf16.msra.mxu0 0
    %447 = vmatprep.subr.bf16.mxu0 0
    %448 = vmatpush2.bf16.msra.mxu0 0
    %449 = vmatprep.subr.bf16.mxu0 0
    %450 = vmatpush2.bf16.msra.mxu0 0
    %451 = vmatprep.mubr.bf16.mxu0 0
    %452 = vmatmul.mubr.bf16.gmra.mxu0 %v403
    %v453 = vpop.f32.mrf.mxu0
    %v454 = vadd.f32 0.0, %v453
    %v455 = vpop.f32.mrf.mxu0
    %v456 = vpop.f32.mrf.mxu0
    %v457 = vadd.f32 0.0, %v456
    %v458 = vpop.f32.mrf.mxu0
    %459 = vmatprep.mubr.bf16.mxu0 0
    %460 = vmatmul.mubr.bf16.gmra.mxu0 %v404
    %v461 = vpop.f32.mrf.mxu0
    %v462 = vadd.f32 0.0, %v461
    %v463 = vpop.f32.mrf.mxu0
    %v464 = vpop.f32.mrf.mxu0
    %v465 = vadd.f32 0.0, %v464
    %v466 = vpop.f32.mrf.mxu0
    %467 = vmatprep.mubr.bf16.mxu0 0
    %468 = vmatmul.mubr.bf16.gmra.mxu0 %v405
    %v469 = vpop.f32.mrf.mxu0
    %v470 = vadd.f32 0.0, %v469
    %v471 = vpop.f32.mrf.mxu0
    %v472 = vpop.f32.mrf.mxu0
    %v473 = vadd.f32 0.0, %v472
    %v474 = vpop.f32.mrf.mxu0
    %475 = vmatprep.mubr.bf16.mxu0 0
    %476 = vmatmul.mubr.bf16.gmra.mxu0 %v406
    %v477 = vpop.f32.mrf.mxu0
    %v478 = vadd.f32 0.0, %v477
    %v479 = vpop.f32.mrf.mxu0
    %v480 = vpop.f32.mrf.mxu0
    %v481 = vadd.f32 0.0, %v480
    %v482 = vpop.f32.mrf.mxu0
    %483 = vmatprep.mubr.bf16.mxu0 0
    %484 = vmatmul.mubr.bf16.gmra.mxu0 %v407
    %v485 = vpop.f32.mrf.mxu0
    %v486 = vadd.f32 0.0, %v485
    %v487 = vpop.f32.mrf.mxu0
    %v488 = vpop.f32.mrf.mxu0
    %v489 = vadd.f32 0.0, %v488
    %v490 = vpop.f32.mrf.mxu0
    %491 = vmatprep.mubr.bf16.mxu0 0
    %492 = vmatmul.mubr.bf16.gmra.mxu0 %v408
    %v493 = vpop.f32.mrf.mxu0
    %v494 = vadd.f32 0.0, %v493
    %v495 = vpop.f32.mrf.mxu0
    %v496 = vpop.f32.mrf.mxu0
    %v497 = vadd.f32 0.0, %v496
    %v498 = vpop.f32.mrf.mxu0
    %499 = vmatprep.mubr.bf16.mxu0 0
    %500 = vmatmul.mubr.bf16.gmra.mxu0 %v409
    %v501 = vpop.f32.mrf.mxu0
    %v502 = vadd.f32 0.0, %v501
    %v503 = vpop.f32.mrf.mxu0
    %v504 = vpop.f32.mrf.mxu0
    %v505 = vadd.f32 0.0, %v504
    %v506 = vpop.f32.mrf.mxu0
    %507 = vmatprep.mubr.bf16.mxu0 0
    %508 = vmatmul.mubr.bf16.gmra.mxu0 %v410
    %v509 = vpop.f32.mrf.mxu0
    %v510 = vadd.f32 0.0, %v509
    %v511 = vpop.f32.mrf.mxu0
    %v512 = vpop.f32.mrf.mxu0
    %v513 = vadd.f32 0.0, %v512
    %v514 = vpop.f32.mrf.mxu0
    %515 = vdwg.mxu0
    %v516 = vsub.f32 0.0, %v454
    %v517 = vsub.f32 0.0, %v457
    %v518 = vsub.f32 0.0, %v462
    %v519 = vsub.f32 0.0, %v465
    %v520 = vsub.f32 0.0, %v470
    %v521 = vsub.f32 0.0, %v473
    %v522 = vsub.f32 0.0, %v478
    %v523 = vsub.f32 0.0, %v481
    %v524 = vsub.f32 0.0, %v486
    %v525 = vsub.f32 0.0, %v489
    %v526 = vsub.f32 0.0, %v494
    %v527 = vsub.f32 0.0, %v497
    %v528 = vsub.f32 0.0, %v502
    %v529 = vsub.f32 0.0, %v505
    %v530 = vsub.f32 0.0, %v510
    %v531 = vsub.f32 0.0, %v513
    %v532 = vpack.c.bf16 %v517, %v516
    %v533 = vpack.c.bf16 %v519, %v518
    %v534 = vpack.c.bf16 %v521, %v520
    %v535 = vpack.c.bf16 %v523, %v522
    %v536 = vpack.c.bf16 %v525, %v524
    %v537 = vpack.c.bf16 %v527, %v526
    %v538 = vpack.c.bf16 %v529, %v528
    %v539 = vpack.c.bf16 %v531, %v530
    %540 = vmatprep.subr.bf16.mxu0 0
    %541 = vmatpush1.bf16.msra.mxu0 %v539
    %542 = vmatprep.subr.bf16.mxu0 0
    %543 = vmatpush1.bf16.msra.mxu0 %v538
    %544 = vmatprep.subr.bf16.mxu0 0
    %545 = vmatpush1.bf16.msra.mxu0 %v537
    %546 = vmatprep.subr.bf16.mxu0 0
    %547 = vmatpush1.bf16.msra.mxu0 %v536
    %548 = vmatprep.subr.bf16.mxu0 0
    %549 = vmatpush1.bf16.msra.mxu0 %v535
    %550 = vmatprep.subr.bf16.mxu0 0
    %551 = vmatpush1.bf16.msra.mxu0 %v534
    %552 = vmatprep.subr.bf16.mxu0 0
    %553 = vmatpush1.bf16.msra.mxu0 %v533
    %554 = vmatprep.subr.bf16.mxu0 0
    %555 = vmatpush1.bf16.msra.mxu0 %v532
    %556 = vmatprep.subr.bf16.mxu0 0
    %557 = vmatpush2.bf16.msra.mxu0 0
    %558 = vmatprep.subr.bf16.mxu0 0
    %559 = vmatpush2.bf16.msra.mxu0 0
    %560 = vmatprep.subr.bf16.mxu0 0
    %561 = vmatpush2.bf16.msra.mxu0 0
    %562 = vmatprep.subr.bf16.mxu0 0
    %563 = vmatpush2.bf16.msra.mxu0 0
    %564 = vmatprep.subr.bf16.mxu0 0
    %565 = vmatpush2.bf16.msra.mxu0 0
    %566 = vmatprep.subr.bf16.mxu0 0
    %567 = vmatpush2.bf16.msra.mxu0 0
    %568 = vmatprep.subr.bf16.mxu0 0
    %569 = vmatpush2.bf16.msra.mxu0 0
    %570 = vmatprep.subr.bf16.mxu0 0
    %571 = vmatpush2.bf16.msra.mxu0 0
    %572 = vmatprep.mubr.bf16.mxu0 0
    %573 = vmatmul.mubr.bf16.gmra.mxu0 %v403
    %v574 = vpop.f32.mrf.mxu0
    %v575 = vadd.f32 0.0, %v574
    %v576 = vpop.f32.mrf.mxu0
    %v577 = vpop.f32.mrf.mxu0
    %v578 = vadd.f32 0.0, %v577
    %v579 = vpop.f32.mrf.mxu0
    %580 = vmatprep.mubr.bf16.mxu0 0
    %581 = vmatmul.mubr.bf16.gmra.mxu0 %v404
    %v582 = vpop.f32.mrf.mxu0
    %v583 = vadd.f32 0.0, %v582
    %v584 = vpop.f32.mrf.mxu0
    %v585 = vpop.f32.mrf.mxu0
    %v586 = vadd.f32 0.0, %v585
    %v587 = vpop.f32.mrf.mxu0
    %588 = vmatprep.mubr.bf16.mxu0 0
    %589 = vmatmul.mubr.bf16.gmra.mxu0 %v405
    %v590 = vpop.f32.mrf.mxu0
    %v591 = vadd.f32 0.0, %v590
    %v592 = vpop.f32.mrf.mxu0
    %v593 = vpop.f32.mrf.mxu0
    %v594 = vadd.f32 0.0, %v593
    %v595 = vpop.f32.mrf.mxu0
    %596 = vmatprep.mubr.bf16.mxu0 0
    %597 = vmatmul.mubr.bf16.gmra.mxu0 %v406
    %v598 = vpop.f32.mrf.mxu0
    %v599 = vadd.f32 0.0, %v598
    %v600 = vpop.f32.mrf.mxu0
    %v601 = vpop.f32.mrf.mxu0
    %v602 = vadd.f32 0.0, %v601
    %v603 = vpop.f32.mrf.mxu0
    %604 = vmatprep.mubr.bf16.mxu0 0
    %605 = vmatmul.mubr.bf16.gmra.mxu0 %v407
    %v606 = vpop.f32.mrf.mxu0
    %v607 = vadd.f32 0.0, %v606
    %v608 = vpop.f32.mrf.mxu0
    %v609 = vpop.f32.mrf.mxu0
    %v610 = vadd.f32 0.0, %v609
    %v611 = vpop.f32.mrf.mxu0
    %612 = vmatprep.mubr.bf16.mxu0 0
    %613 = vmatmul.mubr.bf16.gmra.mxu0 %v408
    %v614 = vpop.f32.mrf.mxu0
    %v615 = vadd.f32 0.0, %v614
    %v616 = vpop.f32.mrf.mxu0
    %v617 = vpop.f32.mrf.mxu0
    %v618 = vadd.f32 0.0, %v617
    %v619 = vpop.f32.mrf.mxu0
    %620 = vmatprep.mubr.bf16.mxu0 0
    %621 = vmatmul.mubr.bf16.gmra.mxu0 %v409
    %v622 = vpop.f32.mrf.mxu0
    %v623 = vadd.f32 0.0, %v622
    %v624 = vpop.f32.mrf.mxu0
    %v625 = vpop.f32.mrf.mxu0
    %v626 = vadd.f32 0.0, %v625
    %v627 = vpop.f32.mrf.mxu0
    %628 = vmatprep.mubr.bf16.mxu0 0
    %629 = vmatmul.mubr.bf16.gmra.mxu0 %v410
    %v630 = vpop.f32.mrf.mxu0
    %v631 = vadd.f32 0.0, %v630
    %v632 = vpop.f32.mrf.mxu0
    %v633 = vpop.f32.mrf.mxu0
    %v634 = vadd.f32 0.0, %v633
    %v635 = vpop.f32.mrf.mxu0
    %636 = vdwg.mxu0
    %v637 = vmul.f32 %v575, -2.0
    %v638 = vmul.f32 %v578, -2.0
    %v639 = vmul.f32 %v583, -2.0
    %v640 = vmul.f32 %v586, -2.0
    %v641 = vmul.f32 %v591, -2.0
    %v642 = vmul.f32 %v594, -2.0
    %v643 = vmul.f32 %v599, -2.0
    %v644 = vmul.f32 %v602, -2.0
    %v645 = vmul.f32 %v607, -2.0
    %v646 = vmul.f32 %v610, -2.0
    %v647 = vmul.f32 %v615, -2.0
    %v648 = vmul.f32 %v618, -2.0
    %v649 = vmul.f32 %v623, -2.0
    %v650 = vmul.f32 %v626, -2.0
    %v651 = vmul.f32 %v631, -2.0
    %v652 = vmul.f32 %v634, -2.0
    %v653 = vsub.f32 %v637, %v331
    %v654 = vsub.f32 %v638, %v332
    %v655 = vsub.f32 %v639, %v333
    %v656 = vsub.f32 %v640, %v334
    %v657 = vsub.f32 %v641, %v335
    %v658 = vsub.f32 %v642, %v336
    %v659 = vsub.f32 %v643, %v337
    %v660 = vsub.f32 %v644, %v338
    %v661 = vsub.f32 %v645, %v339
    %v662 = vsub.f32 %v646, %v340
    %v663 = vsub.f32 %v647, %v341
    %v664 = vsub.f32 %v648, %v342
    %v665 = vsub.f32 %v649, %v343
    %v666 = vsub.f32 %v650, %v344
    %v667 = vsub.f32 %v651, %v345
    %v668 = vsub.f32 %v652, %v346
    %v669 = vpack.c.bf16 %v654, %v653
    %v670 = vpack.c.bf16 %v656, %v655
    %v671 = vpack.c.bf16 %v658, %v657
    %v672 = vpack.c.bf16 %v660, %v659
    %v673 = vpack.c.bf16 %v662, %v661
    %v674 = vpack.c.bf16 %v664, %v663
    %v675 = vpack.c.bf16 %v666, %v665
    %v676 = vpack.c.bf16 %v668, %v667
    %v677 = vld [vmem:[#allocation8] sm:$0xf]
    %v678 = vld [vmem:[#allocation8 + $0x4] sm:$0xf]
    %v679 = vld [vmem:[#allocation8 + $0x8] sm:$0xf]
    %v680 = vld [vmem:[#allocation8 + $0xc] sm:$0xf]
    %v681 = vld [vmem:[#allocation8 + $0x10] sm:$0xf]
    %v682 = vld [vmem:[#allocation8 + $0x14] sm:$0xf]
    %v683 = vld [vmem:[#allocation8 + $0x18] sm:$0xf]
    %v684 = vld [vmem:[#allocation8 + $0x1c] sm:$0xf]
    %v685 = vld [vmem:[#allocation8 + $0x20] sm:$0xf]
    %v686 = vld [vmem:[#allocation8 + $0x24] sm:$0xf]
    %v687 = vld [vmem:[#allocation8 + $0x28] sm:$0xf]
    %v688 = vld [vmem:[#allocation8 + $0x2c] sm:$0xf]
    %v689 = vld [vmem:[#allocation8 + $0x30] sm:$0xf]
    %v690 = vld [vmem:[#allocation8 + $0x34] sm:$0xf]
    %v691 = vld [vmem:[#allocation8 + $0x38] sm:$0xf]
    %v692 = vld [vmem:[#allocation8 + $0x3c] sm:$0xf]
    %v693 = vld [vmem:[#allocation8 + $0x40] sm:$0xf]
    %v694 = vld [vmem:[#allocation8 + $0x44] sm:$0xf]
    %v695 = vld [vmem:[#allocation8 + $0x48] sm:$0xf]
    %v696 = vld [vmem:[#allocation8 + $0x4c] sm:$0xf]
    %v697 = vld [vmem:[#allocation8 + $0x50] sm:$0xf]
    %v698 = vld [vmem:[#allocation8 + $0x54] sm:$0xf]
    %v699 = vld [vmem:[#allocation8 + $0x58] sm:$0xf]
    %v700 = vld [vmem:[#allocation8 + $0x5c] sm:$0xf]
    %v701 = vld [vmem:[#allocation8 + $0x60] sm:$0xf]
    %v702 = vld [vmem:[#allocation8 + $0x64] sm:$0xf]
    %v703 = vld [vmem:[#allocation8 + $0x68] sm:$0xf]
    %v704 = vld [vmem:[#allocation8 + $0x6c] sm:$0xf]
    %v705 = vld [vmem:[#allocation8 + $0x70] sm:$0xf]
    %v706 = vld [vmem:[#allocation8 + $0x74] sm:$0xf]
    %v707 = vld [vmem:[#allocation8 + $0x78] sm:$0xf]
    %v708 = vld [vmem:[#allocation8 + $0x7c] sm:$0xf]
    %v709 = vld [vmem:[#allocation8 + $0x80] sm:$0xf]
    %v710 = vld [vmem:[#allocation8 + $0x84] sm:$0xf]
    %v711 = vld [vmem:[#allocation8 + $0x88] sm:$0xf]
    %v712 = vld [vmem:[#allocation8 + $0x8c] sm:$0xf]
    %v713 = vld [vmem:[#allocation8 + $0x90] sm:$0xf]
    %v714 = vld [vmem:[#allocation8 + $0x94] sm:$0xf]
    %v715 = vld [vmem:[#allocation8 + $0x98] sm:$0xf]
    %v716 = vld [vmem:[#allocation8 + $0x9c] sm:$0xf]
    %v717 = vld [vmem:[#allocation8 + $0xa0] sm:$0xf]
    %v718 = vld [vmem:[#allocation8 + $0xa4] sm:$0xf]
    %v719 = vld [vmem:[#allocation8 + $0xa8] sm:$0xf]
    %v720 = vld [vmem:[#allocation8 + $0xac] sm:$0xf]
    %v721 = vld [vmem:[#allocation8 + $0xb0] sm:$0xf]
    %v722 = vld [vmem:[#allocation8 + $0xb4] sm:$0xf]
    %v723 = vld [vmem:[#allocation8 + $0xb8] sm:$0xf]
    %v724 = vld [vmem:[#allocation8 + $0xbc] sm:$0xf]
    %v725 = vld [vmem:[%s5] sm:$0x1]
    %v727 = vlaneseq
    %v728 = vshrl.u32 %v727, 7
    %v729 = vsub.s32 0, %v728
    %v730 = vrot.slane %v725, %v729
    %v780 = vunpack.c.l.b16 %v677
    %v781 = vunpack.c.l.b16 %v678
    %v782 = vunpack.c.l.b16 %v679
    %v783 = vunpack.c.l.b16 %v680
    %v784 = vunpack.c.l.b16 %v681
    %v785 = vunpack.c.l.b16 %v682
    %v786 = vunpack.c.l.b16 %v683
    %v787 = vunpack.c.l.b16 %v684
    %v788 = vunpack.c.l.b16 %v685
    %v789 = vunpack.c.l.b16 %v686
    %v790 = vunpack.c.l.b16 %v687
    %v791 = vunpack.c.l.b16 %v688
    %v792 = vunpack.c.l.b16 %v689
    %v793 = vunpack.c.l.b16 %v690
    %v794 = vunpack.c.l.b16 %v691
    %v795 = vunpack.c.l.b16 %v692
    %v796 = vunpack.c.l.b16 %v693
    %v797 = vunpack.c.l.b16 %v694
    %v798 = vunpack.c.l.b16 %v695
    %v799 = vunpack.c.l.b16 %v696
    %v800 = vunpack.c.l.b16 %v697
    %v801 = vunpack.c.l.b16 %v698
    %v802 = vunpack.c.l.b16 %v699
    %v803 = vunpack.c.l.b16 %v700
    %v804 = vunpack.c.l.b16 %v701
    %v805 = vunpack.c.l.b16 %v702
    %v806 = vunpack.c.l.b16 %v703
    %v807 = vunpack.c.l.b16 %v704
    %v808 = vunpack.c.l.b16 %v705
    %v809 = vunpack.c.l.b16 %v706
    %v810 = vunpack.c.l.b16 %v707
    %v811 = vunpack.c.l.b16 %v708
    %v812 = vunpack.c.l.b16 %v709
    %v813 = vunpack.c.l.b16 %v710
    %v814 = vunpack.c.l.b16 %v711
    %v815 = vunpack.c.l.b16 %v712
    %v816 = vunpack.c.l.b16 %v713
    %v817 = vunpack.c.l.b16 %v714
    %v818 = vunpack.c.l.b16 %v715
    %v819 = vunpack.c.l.b16 %v716
    %v820 = vunpack.c.l.b16 %v717
    %v821 = vunpack.c.l.b16 %v718
    %v822 = vunpack.c.l.b16 %v719
    %v823 = vunpack.c.l.b16 %v720
    %v824 = vunpack.c.l.b16 %v721
    %v825 = vunpack.c.l.b16 %v722
    %v826 = vunpack.c.l.b16 %v723
    %v827 = vunpack.c.l.b16 %v724
    %v828 = vpack.c.b16 %v781, %v780
    %v829 = vpack.c.b16 %v783, %v782
    %v830 = vpack.c.b16 %v785, %v784
    %v831 = vpack.c.b16 %v787, %v786
    %v832 = vpack.c.b16 %v789, %v788
    %v833 = vpack.c.b16 %v791, %v790
    %v834 = vpack.c.b16 %v793, %v792
    %v835 = vpack.c.b16 %v795, %v794
    %v836 = vpack.c.b16 %v797, %v796
    %v837 = vpack.c.b16 %v799, %v798
    %v838 = vpack.c.b16 %v801, %v800
    %v839 = vpack.c.b16 %v803, %v802
    %v840 = vpack.c.b16 %v805, %v804
    %v841 = vpack.c.b16 %v807, %v806
    %v842 = vpack.c.b16 %v809, %v808
    %v843 = vpack.c.b16 %v811, %v810
    %v844 = vpack.c.b16 %v813, %v812
    %v845 = vpack.c.b16 %v815, %v814
    %v846 = vpack.c.b16 %v817, %v816
    %v847 = vpack.c.b16 %v819, %v818
    %v848 = vpack.c.b16 %v821, %v820
    %v849 = vpack.c.b16 %v823, %v822
    %v850 = vpack.c.b16 %v825, %v824
    %v851 = vpack.c.b16 %v827, %v826
    %876 = vmatprep.subr.bf16.mxu0 0
    %877 = vmatpush1.bf16.msra.mxu0 %v835
    %878 = vmatprep.subr.bf16.mxu0 0
    %879 = vmatpush1.bf16.msra.mxu0 %v834
    %880 = vmatprep.subr.bf16.mxu0 0
    %881 = vmatpush1.bf16.msra.mxu0 %v833
    %882 = vmatprep.subr.bf16.mxu0 0
    %883 = vmatpush1.bf16.msra.mxu0 %v832
    %884 = vmatprep.subr.bf16.mxu0 0
    %885 = vmatpush1.bf16.msra.mxu0 %v831
    %886 = vmatprep.subr.bf16.mxu0 0
    %887 = vmatpush1.bf16.msra.mxu0 %v830
    %888 = vmatprep.subr.bf16.mxu0 0
    %889 = vmatpush1.bf16.msra.mxu0 %v829
    %890 = vmatprep.subr.bf16.mxu0 0
    %891 = vmatpush1.bf16.msra.mxu0 %v828
    %892 = vmatprep.subr.bf16.mxu0 0
    %893 = vmatpush2.bf16.msra.mxu0 %v843
    %894 = vmatprep.subr.bf16.mxu0 0
    %895 = vmatpush2.bf16.msra.mxu0 %v842
    %896 = vmatprep.subr.bf16.mxu0 0
    %897 = vmatpush2.bf16.msra.mxu0 %v841
    %898 = vmatprep.subr.bf16.mxu0 0
    %899 = vmatpush2.bf16.msra.mxu0 %v840
    %900 = vmatprep.subr.bf16.mxu0 0
    %901 = vmatpush2.bf16.msra.mxu0 %v839
    %902 = vmatprep.subr.bf16.mxu0 0
    %903 = vmatpush2.bf16.msra.mxu0 %v838
    %904 = vmatprep.subr.bf16.mxu0 0
    %905 = vmatpush2.bf16.msra.mxu0 %v837
    %906 = vmatprep.subr.bf16.mxu0 0
    %907 = vmatpush2.bf16.msra.mxu0 %v836
    %908 = vmatprep.mubr.bf16.mxu0 %v532
    %909 = vmatmul.mubr.bf16.gmra.mxu0 %v363
    %v910 = vpop.f32.mrf.mxu0
    %v911 = vadd.f32 %v730, %v910
    %v912 = vpop.f32.mrf.mxu0
    %v913 = vpop.f32.mrf.mxu0
    %v914 = vadd.f32 %v730, %v913
    %v915 = vpop.f32.mrf.mxu0
    %916 = vmatprep.mubr.bf16.mxu0 %v533
    %917 = vmatmul.mubr.bf16.gmra.mxu0 %v364
    %v918 = vpop.f32.mrf.mxu0
    %v919 = vadd.f32 %v730, %v918
    %v920 = vpop.f32.mrf.mxu0
    %v921 = vpop.f32.mrf.mxu0
    %v922 = vadd.f32 %v730, %v921
    %v923 = vpop.f32.mrf.mxu0
    %924 = vmatprep.mubr.bf16.mxu0 %v534
    %925 = vmatmul.mubr.bf16.gmra.mxu0 %v365
    %v926 = vpop.f32.mrf.mxu0
    %v927 = vadd.f32 %v730, %v926
    %v928 = vpop.f32.mrf.mxu0
    %v929 = vpop.f32.mrf.mxu0
    %v930 = vadd.f32 %v730, %v929
    %v931 = vpop.f32.mrf.mxu0
    %932 = vmatprep.mubr.bf16.mxu0 %v535
    %933 = vmatmul.mubr.bf16.gmra.mxu0 %v366
    %v934 = vpop.f32.mrf.mxu0
    %v935 = vadd.f32 %v730, %v934
    %v936 = vpop.f32.mrf.mxu0
    %v937 = vpop.f32.mrf.mxu0
    %v938 = vadd.f32 %v730, %v937
    %v939 = vpop.f32.mrf.mxu0
    %940 = vmatprep.mubr.bf16.mxu0 %v536
    %941 = vmatmul.mubr.bf16.gmra.mxu0 %v367
    %v942 = vpop.f32.mrf.mxu0
    %v943 = vadd.f32 %v730, %v942
    %v944 = vpop.f32.mrf.mxu0
    %v945 = vpop.f32.mrf.mxu0
    %v946 = vadd.f32 %v730, %v945
    %v947 = vpop.f32.mrf.mxu0
    %948 = vmatprep.mubr.bf16.mxu0 %v537
    %949 = vmatmul.mubr.bf16.gmra.mxu0 %v368
    %v950 = vpop.f32.mrf.mxu0
    %v951 = vadd.f32 %v730, %v950
    %v952 = vpop.f32.mrf.mxu0
    %v953 = vpop.f32.mrf.mxu0
    %v954 = vadd.f32 %v730, %v953
    %v955 = vpop.f32.mrf.mxu0
    %956 = vmatprep.mubr.bf16.mxu0 %v538
    %957 = vmatmul.mubr.bf16.gmra.mxu0 %v369
    %v958 = vpop.f32.mrf.mxu0
    %v959 = vadd.f32 %v730, %v958
    %v960 = vpop.f32.mrf.mxu0
    %v961 = vpop.f32.mrf.mxu0
    %v962 = vadd.f32 %v730, %v961
    %v963 = vpop.f32.mrf.mxu0
    %964 = vmatprep.mubr.bf16.mxu0 %v539
    %965 = vmatmul.mubr.bf16.gmra.mxu0 %v370
    %v966 = vpop.f32.mrf.mxu0
    %v967 = vadd.f32 %v730, %v966
    %v968 = vpop.f32.mrf.mxu0
    %v969 = vpop.f32.mrf.mxu0
    %v970 = vadd.f32 %v730, %v969
    %v971 = vpop.f32.mrf.mxu0
    %972 = vdwg.mxu0
    %973 = vmatprep.subr.bf16.mxu0 0
    %974 = vmatpush1.bf16.msra.mxu0 %v851
    %975 = vmatprep.subr.bf16.mxu0 0
    %976 = vmatpush1.bf16.msra.mxu0 %v850
    %977 = vmatprep.subr.bf16.mxu0 0
    %978 = vmatpush1.bf16.msra.mxu0 %v849
    %979 = vmatprep.subr.bf16.mxu0 0
    %980 = vmatpush1.bf16.msra.mxu0 %v848
    %981 = vmatprep.subr.bf16.mxu0 0
    %982 = vmatpush1.bf16.msra.mxu0 %v847
    %983 = vmatprep.subr.bf16.mxu0 0
    %984 = vmatpush1.bf16.msra.mxu0 %v846
    %985 = vmatprep.subr.bf16.mxu0 0
    %986 = vmatpush1.bf16.msra.mxu0 %v845
    %987 = vmatprep.subr.bf16.mxu0 0
    %988 = vmatpush1.bf16.msra.mxu0 %v844
    %989 = vmatprep.subr.bf16.mxu0 0
    %990 = vmatpush2.bf16.msra.mxu0 0
    %991 = vmatprep.subr.bf16.mxu0 0
    %992 = vmatpush2.bf16.msra.mxu0 0
    %993 = vmatprep.subr.bf16.mxu0 0
    %994 = vmatpush2.bf16.msra.mxu0 0
    %995 = vmatprep.subr.bf16.mxu0 0
    %996 = vmatpush2.bf16.msra.mxu0 0
    %997 = vmatprep.subr.bf16.mxu0 0
    %998 = vmatpush2.bf16.msra.mxu0 0
    %999 = vmatprep.subr.bf16.mxu0 0
    %1000 = vmatpush2.bf16.msra.mxu0 0
    %1001 = vmatprep.subr.bf16.mxu0 0
    %1002 = vmatpush2.bf16.msra.mxu0 0
    %1003 = vmatprep.subr.bf16.mxu0 0
    %1004 = vmatpush2.bf16.msra.mxu0 0
    %1005 = vmatprep.mubr.bf16.mxu0 0
    %1006 = vmatmul.mubr.bf16.gmra.mxu0 %v669
    %v1007 = vpop.f32.mrf.mxu0
    %v1008 = vadd.f32 %v911, %v1007
    %v1009 = vpop.f32.mrf.mxu0
    %v1010 = vpop.f32.mrf.mxu0
    %v1011 = vadd.f32 %v914, %v1010
    %v1012 = vpop.f32.mrf.mxu0
    %1013 = vmatprep.mubr.bf16.mxu0 0
    %1014 = vmatmul.mubr.bf16.gmra.mxu0 %v670
    %v1015 = vpop.f32.mrf.mxu0
    %v1016 = vadd.f32 %v919, %v1015
    %v1017 = vpop.f32.mrf.mxu0
    %v1018 = vpop.f32.mrf.mxu0
    %v1019 = vadd.f32 %v922, %v1018
    %v1020 = vpop.f32.mrf.mxu0
    %1021 = vmatprep.mubr.bf16.mxu0 0
    %1022 = vmatmul.mubr.bf16.gmra.mxu0 %v671
    %v1023 = vpop.f32.mrf.mxu0
    %v1024 = vadd.f32 %v927, %v1023
    %v1025 = vpop.f32.mrf.mxu0
    %v1026 = vpop.f32.mrf.mxu0
    %v1027 = vadd.f32 %v930, %v1026
    %v1028 = vpop.f32.mrf.mxu0
    %1029 = vmatprep.mubr.bf16.mxu0 0
    %1030 = vmatmul.mubr.bf16.gmra.mxu0 %v672
    %v1031 = vpop.f32.mrf.mxu0
    %v1032 = vadd.f32 %v935, %v1031
    %v1033 = vpop.f32.mrf.mxu0
    %v1034 = vpop.f32.mrf.mxu0
    %v1035 = vadd.f32 %v938, %v1034
    %v1036 = vpop.f32.mrf.mxu0
    %1037 = vmatprep.mubr.bf16.mxu0 0
    %1038 = vmatmul.mubr.bf16.gmra.mxu0 %v673
    %v1039 = vpop.f32.mrf.mxu0
    %v1040 = vadd.f32 %v943, %v1039
    %v1041 = vpop.f32.mrf.mxu0
    %v1042 = vpop.f32.mrf.mxu0
    %v1043 = vadd.f32 %v946, %v1042
    %v1044 = vpop.f32.mrf.mxu0
    %1045 = vmatprep.mubr.bf16.mxu0 0
    %1046 = vmatmul.mubr.bf16.gmra.mxu0 %v674
    %v1047 = vpop.f32.mrf.mxu0
    %v1048 = vadd.f32 %v951, %v1047
    %v1049 = vpop.f32.mrf.mxu0
    %v1050 = vpop.f32.mrf.mxu0
    %v1051 = vadd.f32 %v954, %v1050
    %v1052 = vpop.f32.mrf.mxu0
    %1053 = vmatprep.mubr.bf16.mxu0 0
    %1054 = vmatmul.mubr.bf16.gmra.mxu0 %v675
    %v1055 = vpop.f32.mrf.mxu0
    %v1056 = vadd.f32 %v959, %v1055
    %v1057 = vpop.f32.mrf.mxu0
    %v1058 = vpop.f32.mrf.mxu0
    %v1059 = vadd.f32 %v962, %v1058
    %v1060 = vpop.f32.mrf.mxu0
    %1061 = vmatprep.mubr.bf16.mxu0 0
    %1062 = vmatmul.mubr.bf16.gmra.mxu0 %v676
    %v1063 = vpop.f32.mrf.mxu0
    %v1064 = vadd.f32 %v967, %v1063
    %v1065 = vpop.f32.mrf.mxu0
    %v1066 = vpop.f32.mrf.mxu0
    %v1067 = vadd.f32 %v970, %v1066
    %v1068 = vpop.f32.mrf.mxu0
    %1069 = vdwg.mxu0
    %v1070 = vmax.f32 %v1008, 0.0
    %v1071 = vmax.f32 %v1011, 0.0
    %v1072 = vmax.f32 %v1016, 0.0
    %v1073 = vmax.f32 %v1019, 0.0
    %v1074 = vmax.f32 %v1024, 0.0
    %v1075 = vmax.f32 %v1027, 0.0
    %v1076 = vmax.f32 %v1032, 0.0
    %v1077 = vmax.f32 %v1035, 0.0
    %v1078 = vmax.f32 %v1040, 0.0
    %v1079 = vmax.f32 %v1043, 0.0
    %v1080 = vmax.f32 %v1048, 0.0
    %v1081 = vmax.f32 %v1051, 0.0
    %v1082 = vmax.f32 %v1056, 0.0
    %v1083 = vmax.f32 %v1059, 0.0
    %v1084 = vmax.f32 %v1064, 0.0
    %v1085 = vmax.f32 %v1067, 0.0
    %v1086 = vpack.c.bf16 %v1071, %v1070
    %v1087 = vpack.c.bf16 %v1073, %v1072
    %v1088 = vpack.c.bf16 %v1075, %v1074
    %v1089 = vpack.c.bf16 %v1077, %v1076
    %v1090 = vpack.c.bf16 %v1079, %v1078
    %v1091 = vpack.c.bf16 %v1081, %v1080
    %v1092 = vpack.c.bf16 %v1083, %v1082
    %v1093 = vpack.c.bf16 %v1085, %v1084
    %v1094 = vld [vmem:[#allocation10] sm:$0xf]
    %v1095 = vld [vmem:[#allocation10 + $0x4] sm:$0xf]
    %v1096 = vld [vmem:[#allocation10 + $0x8] sm:$0xf]
    %v1097 = vld [vmem:[#allocation10 + $0xc] sm:$0xf]
    %v1098 = vld [vmem:[#allocation10 + $0x10] sm:$0xf]
    %v1099 = vld [vmem:[#allocation10 + $0x14] sm:$0xf]
    %v1100 = vld [vmem:[#allocation10 + $0x18] sm:$0xf]
    %v1101 = vld [vmem:[#allocation10 + $0x1c] sm:$0xf]
    %v1102 = vld [vmem:[#allocation10 + $0x20] sm:$0xf]
    %v1103 = vld [vmem:[#allocation10 + $0x24] sm:$0xf]
    %v1104 = vld [vmem:[#allocation10 + $0x28] sm:$0xf]
    %v1105 = vld [vmem:[#allocation10 + $0x2c] sm:$0xf]
    %v1106 = vld [vmem:[#allocation10 + $0x30] sm:$0xf]
    %v1107 = vld [vmem:[#allocation10 + $0x34] sm:$0xf]
    %v1108 = vld [vmem:[#allocation10 + $0x38] sm:$0xf]
    %v1109 = vld [vmem:[#allocation10 + $0x3c] sm:$0xf]
    %v1110 = vld [vmem:[%s7] sm:$0x1]
    %v1112 = vlaneseq
    %v1113 = vshrl.u32 %v1112, 7
    %v1114 = vsub.s32 0, %v1113
    %v1115 = vrot.slane %v1110, %v1114
    %v1133 = vunpack.c.l.b16 %v1094
    %v1134 = vunpack.c.l.b16 %v1095
    %v1135 = vunpack.c.l.b16 %v1096
    %v1136 = vunpack.c.l.b16 %v1097
    %v1137 = vunpack.c.l.b16 %v1098
    %v1138 = vunpack.c.l.b16 %v1099
    %v1139 = vunpack.c.l.b16 %v1100
    %v1140 = vunpack.c.l.b16 %v1101
    %v1141 = vunpack.c.l.b16 %v1102
    %v1142 = vunpack.c.l.b16 %v1103
    %v1143 = vunpack.c.l.b16 %v1104
    %v1144 = vunpack.c.l.b16 %v1105
    %v1145 = vunpack.c.l.b16 %v1106
    %v1146 = vunpack.c.l.b16 %v1107
    %v1147 = vunpack.c.l.b16 %v1108
    %v1148 = vunpack.c.l.b16 %v1109
    %v1149 = vpack.c.b16 %v1134, %v1133
    %v1150 = vpack.c.b16 %v1136, %v1135
    %v1151 = vpack.c.b16 %v1138, %v1137
    %v1152 = vpack.c.b16 %v1140, %v1139
    %v1153 = vpack.c.b16 %v1142, %v1141
    %v1154 = vpack.c.b16 %v1144, %v1143
    %v1155 = vpack.c.b16 %v1146, %v1145
    %v1156 = vpack.c.b16 %v1148, %v1147
    %1165 = vmatprep.subr.bf16.mxu0 0
    %1166 = vmatpush1.bf16.msra.mxu0 %v1156
    %1167 = vmatprep.subr.bf16.mxu0 0
    %1168 = vmatpush1.bf16.msra.mxu0 %v1155
    %1169 = vmatprep.subr.bf16.mxu0 0
    %1170 = vmatpush1.bf16.msra.mxu0 %v1154
    %1171 = vmatprep.subr.bf16.mxu0 0
    %1172 = vmatpush1.bf16.msra.mxu0 %v1153
    %1173 = vmatprep.subr.bf16.mxu0 0
    %1174 = vmatpush1.bf16.msra.mxu0 %v1152
    %1175 = vmatprep.subr.bf16.mxu0 0
    %1176 = vmatpush1.bf16.msra.mxu0 %v1151
    %1177 = vmatprep.subr.bf16.mxu0 0
    %1178 = vmatpush1.bf16.msra.mxu0 %v1150
    %1179 = vmatprep.subr.bf16.mxu0 0
    %1180 = vmatpush1.bf16.msra.mxu0 %v1149
    %1181 = vmatprep.subr.bf16.mxu0 0
    %1182 = vmatpush2.bf16.msra.mxu0 0
    %1183 = vmatprep.subr.bf16.mxu0 0
    %1184 = vmatpush2.bf16.msra.mxu0 0
    %1185 = vmatprep.subr.bf16.mxu0 0
    %1186 = vmatpush2.bf16.msra.mxu0 0
    %1187 = vmatprep.subr.bf16.mxu0 0
    %1188 = vmatpush2.bf16.msra.mxu0 0
    %1189 = vmatprep.subr.bf16.mxu0 0
    %1190 = vmatpush2.bf16.msra.mxu0 0
    %1191 = vmatprep.subr.bf16.mxu0 0
    %1192 = vmatpush2.bf16.msra.mxu0 0
    %1193 = vmatprep.subr.bf16.mxu0 0
    %1194 = vmatpush2.bf16.msra.mxu0 0
    %1195 = vmatprep.subr.bf16.mxu0 0
    %1196 = vmatpush2.bf16.msra.mxu0 0
    %1197 = vmatprep.mubr.bf16.mxu0 0
    %1198 = vmatmul.mubr.bf16.gmra.mxu0 %v1086
    %v1199 = vpop.f32.mrf.mxu0
    %v1200 = vadd.f32 %v1115, %v1199
    %v1201 = vpop.f32.mrf.mxu0
    %v1202 = vpop.f32.mrf.mxu0
    %v1203 = vadd.f32 %v1115, %v1202
    %v1204 = vpop.f32.mrf.mxu0
    %1205 = vmatprep.mubr.bf16.mxu0 0
    %1206 = vmatmul.mubr.bf16.gmra.mxu0 %v1087
    %v1207 = vpop.f32.mrf.mxu0
    %v1208 = vadd.f32 %v1115, %v1207
    %v1209 = vpop.f32.mrf.mxu0
    %v1210 = vpop.f32.mrf.mxu0
    %v1211 = vadd.f32 %v1115, %v1210
    %v1212 = vpop.f32.mrf.mxu0
    %1213 = vmatprep.mubr.bf16.mxu0 0
    %1214 = vmatmul.mubr.bf16.gmra.mxu0 %v1088
    %v1215 = vpop.f32.mrf.mxu0
    %v1216 = vadd.f32 %v1115, %v1215
    %v1217 = vpop.f32.mrf.mxu0
    %v1218 = vpop.f32.mrf.mxu0
    %v1219 = vadd.f32 %v1115, %v1218
    %v1220 = vpop.f32.mrf.mxu0
    %1221 = vmatprep.mubr.bf16.mxu0 0
    %1222 = vmatmul.mubr.bf16.gmra.mxu0 %v1089
    %v1223 = vpop.f32.mrf.mxu0
    %v1224 = vadd.f32 %v1115, %v1223
    %v1225 = vpop.f32.mrf.mxu0
    %v1226 = vpop.f32.mrf.mxu0
    %v1227 = vadd.f32 %v1115, %v1226
    %v1228 = vpop.f32.mrf.mxu0
    %1229 = vmatprep.mubr.bf16.mxu0 0
    %1230 = vmatmul.mubr.bf16.gmra.mxu0 %v1090
    %v1231 = vpop.f32.mrf.mxu0
    %v1232 = vadd.f32 %v1115, %v1231
    %v1233 = vpop.f32.mrf.mxu0
    %v1234 = vpop.f32.mrf.mxu0
    %v1235 = vadd.f32 %v1115, %v1234
    %v1236 = vpop.f32.mrf.mxu0
    %1237 = vmatprep.mubr.bf16.mxu0 0
    %1238 = vmatmul.mubr.bf16.gmra.mxu0 %v1091
    %v1239 = vpop.f32.mrf.mxu0
    %v1240 = vadd.f32 %v1115, %v1239
    %v1241 = vpop.f32.mrf.mxu0
    %v1242 = vpop.f32.mrf.mxu0
    %v1243 = vadd.f32 %v1115, %v1242
    %v1244 = vpop.f32.mrf.mxu0
    %1245 = vmatprep.mubr.bf16.mxu0 0
    %1246 = vmatmul.mubr.bf16.gmra.mxu0 %v1092
    %v1247 = vpop.f32.mrf.mxu0
    %v1248 = vadd.f32 %v1115, %v1247
    %v1249 = vpop.f32.mrf.mxu0
    %v1250 = vpop.f32.mrf.mxu0
    %v1251 = vadd.f32 %v1115, %v1250
    %v1252 = vpop.f32.mrf.mxu0
    %1253 = vmatprep.mubr.bf16.mxu0 0
    %1254 = vmatmul.mubr.bf16.gmra.mxu0 %v1093
    %v1255 = vpop.f32.mrf.mxu0
    %v1256 = vadd.f32 %v1115, %v1255
    %v1257 = vpop.f32.mrf.mxu0
    %v1258 = vpop.f32.mrf.mxu0
    %v1259 = vadd.f32 %v1115, %v1258
    %v1260 = vpop.f32.mrf.mxu0
    %1261 = vdwg.mxu0
    %1262 = vst [vmem:[#allocation11] sm:$0xff] %v1200
    %1263 = vst [vmem:[#allocation11 + $0x8] sm:$0xff] %v1203
    %1264 = vst [vmem:[#allocation11 + $0x10] sm:$0xff] %v1208
    %1265 = vst [vmem:[#allocation11 + $0x18] sm:$0xff] %v1211
    %1266 = vst [vmem:[#allocation11 + $0x20] sm:$0xff] %v1216
    %1267 = vst [vmem:[#allocation11 + $0x28] sm:$0xff] %v1219
    %1268 = vst [vmem:[#allocation11 + $0x30] sm:$0xff] %v1224
    %1269 = vst [vmem:[#allocation11 + $0x38] sm:$0xff] %v1227
    %1270 = vst [vmem:[#allocation11 + $0x40] sm:$0xff] %v1232
    %1271 = vst [vmem:[#allocation11 + $0x48] sm:$0xff] %v1235
    %1272 = vst [vmem:[#allocation11 + $0x50] sm:$0xff] %v1240
    %1273 = vst [vmem:[#allocation11 + $0x58] sm:$0xff] %v1243
    %1274 = vst [vmem:[#allocation11 + $0x60] sm:$0xff] %v1248
    %1275 = vst [vmem:[#allocation11 + $0x68] sm:$0xff] %v1251
    %1276 = vst [vmem:[#allocation11 + $0x70] sm:$0xff] %v1256
    %1277 = vst [vmem:[#allocation11 + $0x78] sm:$0xff] %v1259
    // Predicated region
    $region54: #{tpu_custom_call.1} parent=1 // pred_check
      _
    $region55: #{tpu_custom_call.1} parent=1 // pred_check_branch
      %1279 = sbr.rel (0) target = $region57
    $region56: #{tpu_custom_call.1} parent=1 // pred_region
      %s1281 = ssub.s32 2048, 2048
      %1282 = vsyncadd [#allocation4], %s1281
      %s1283 = sshll.u32 [#allocation11], 4
      %s1284 = int_to_ptr.vmem [resolvable:$true] %s1283
      %1289 = dma.vmem_to_hbm [thread:$0]  %s1284, 2048, %s8, [#allocation4], 128, 128, 8
    $region57: #{tpu_custom_call.1} parent=1 // pred_fallthru
      _
    // Predicated region
    $region58: #{tpu_custom_call.1} parent=1 // pred_check
      _
    $region59: #{tpu_custom_call.1} parent=1 // pred_check_branch
      %1291 = sbr.rel (0) target = $region61
    $region60: #{tpu_custom_call.1} parent=1 // pred_region
      %1292 = dma.done [#allocation4], 2048
    $region61: #{tpu_custom_call.1} parent=1 // pred_fallthru
      _
    %1293 = vsyncpa [#allocation3], 1
    %1294 = vsyncpa [#allocation6], 1
    %1295 = vsyncpa [#allocation9], 1
    %1296 = vsyncpa [#allocation4], 1

</llo_original>
